<compile_context>
chip_gen: v7x
topology: tpu7x:2x2x1
jax: 0.10.0
libtpu: 0.0.40
codegen_flags: <defaults>
</compile_context>

<pallas_src>
import numpy as np
import jax
import jax.numpy as jnp
from jax import lax
from jax.experimental import pallas as pl
from jax.experimental.pallas import tpu as pltpu


# --------------------------------------------------------------------- fused kernel

def _make_fused_kernel(version, L, nh, d, wb, N, nT):
    """qkv-proj + residual mixing + cosine window attention + out-proj for `wb`
    windows per grid step.  All of `version`, `L`, `nh`, `d`, `wb`, `N`, `nT` static."""
    C = nh * d
    f32 = jnp.float32
    bf16 = jnp.bfloat16

    def kernel(*refs):
        it = iter(refs)
        wts_ref = next(it)                        # SMEM (L+1,) residual weights
        x_ref = next(it)                          # (wb, N, C)
        prev_ref = next(it) if L > 0 else None    # (L, wb, N, C)
        w3_ref = next(it)                         # (3, C, C)   qkv weight, (in, out)
        pw_ref = next(it)                         # (C, C)      proj weight, (in, out)
        pb_ref = next(it)                         # (1, C)      proj bias
        ls_ref = next(it)                         # (1, C)      per-column logit scale
        hblk_ref = next(it)                       # (C, C)      block-diag head ones
        hm_ref = next(it)                         # (nh*N, C)   0/1 head-selection mask
        bm_ref = next(it)                         # (nT, N, nh*N) bias(+mask) - shift
        o_ref = next(it)                          # (wb, N, C)  final output
        cur_ref = next(it)                        # (wb, N, C)  pre-mixing Q/K/V slab

        x2 = x_ref[...].reshape(wb * N, C)

        # qkv projection (qkv_bias=False).  Kept f32 (tiny at C=32).
        # TODO(synk): qkv_bias=True path (q_bias / v_bias) not implemented; the module
        # default (and this config) is qkv_bias=False.
        q_all = jnp.dot(x2, w3_ref[0], preferred_element_type=f32)
        k_all = jnp.dot(x2, w3_ref[1], preferred_element_type=f32)
        v_all = jnp.dot(x2, w3_ref[2], preferred_element_type=f32)

        cur = {"Q": q_all, "K": k_all, "V": v_all}[version]
        cur_ref[...] = cur.reshape(wb, N, C)

        # residual mixing across the layer stack (attn_act = nn.Identity)
        mixed = wts_ref[L] * cur
        for l in range(L):
            mixed = mixed + wts_ref[l] * prev_ref[l].reshape(wb * N, C)
        if version == "Q":
            q_all = mixed
        elif version == "K":
            k_all = mixed
        else:
            v_all = mixed

        # F.normalize(dim=-1) per head, lane-dense on the (wb*N, C) slab: per-head
        # sum of squares via a resident block-diagonal ones matmul (MXU), rsqrt on EUP.
        hblk = hblk_ref[...]

        def normalize(t):
            ssq = jnp.dot(t * t, hblk, preferred_element_type=f32)
            return t * lax.rsqrt(jnp.maximum(ssq, 1e-24))   # == t / max(||t||, 1e-12)

        qn = normalize(q_all) * ls_ref[...]       # logit scale folded into q (f32)
        kn = normalize(k_all)

        hm = hm_ref[...]                          # (nh*N, C) f32 0/1
        hm_b = hm.astype(bf16)                    # rhs of the softmax-denominator matmul
        g = pl.program_id(0)

        outs = []
        for j in range(wb):                       # static unroll over windows in the step
            r0 = j * N
            qj_b = qn[r0:r0 + N].astype(bf16)                                   # (N, C)
            kt_b = (jnp.concatenate([kn[r0:r0 + N]] * nh, axis=0) * hm).astype(bf16)
            vt_b = (jnp.concatenate([v_all[r0:r0 + N]] * nh, axis=0) * hm).astype(bf16)

            # head-blocked scores: s[q, h*N + k] = ls_h * <q_hat_h, k_hat_h>
            # (contract last axis of both operands -> no transpose materialized)
            s = lax.dot_general(qj_b, kt_b, (((1,), (1,)), ((), ())),
                                preferred_element_type=f32)                      # (N, nh*N)

            # bias + mask + exp-shift pre-folded into bm -> one add, no row-max needed
            if nT == 1:
                bm = bm_ref[0]
            elif wb % nT == 0:
                bm = bm_ref[j % nT]               # static mask index
            else:
                bm = bm_ref[(g * wb + j) % nT]    # dynamic leading-axis index
            e = jnp.exp(s + bm)
            e_b = e.astype(bf16)

            num = jnp.dot(e_b, vt_b, preferred_element_type=f32)                 # (N, C)
            den = jnp.dot(e_b, hm_b, preferred_element_type=f32)                 # (N, C)
            outs.append(num * pl.reciprocal(den, approx=True))

        attn_cat = jnp.concatenate(outs, axis=0)                                 # (wb*N, C)
        proj = jnp.dot(attn_cat, pw_ref[...], preferred_element_type=f32) + pb_ref[...]
        o_ref[...] = proj.reshape(wb, N, C)

    return kernel


def _pick_wb(B_):
    """Windows per grid step: fat steps amortize per-step overhead, while keeping >=2
    'parallel' steps so both v7x TensorCores get work."""
    for wb in (8, 4, 2):
        if B_ % wb == 0 and B_ // wb >= 2:
            return wb
    return 1


# -------------------------------------------------------- relative-position-bias glue

def _relative_position_index(window_size):
    Wh, Ww = window_size
    coords = np.stack(np.meshgrid(np.arange(Wh), np.arange(Ww), indexing="ij"))
    coords_flatten = coords.reshape(2, -1)
    rel = coords_flatten[:, :, None] - coords_flatten[:, None, :]
    rel = rel.transpose(1, 2, 0).astype(np.int64)
    rel[..., 0] += Wh - 1
    rel[..., 1] += Ww - 1
    rel[..., 0] *= 2 * Ww - 1
    return rel.sum(-1)                                                  # (N, N)


def _relative_coords_table(window_size, pretrained_window_size=(0, 0)):
    Wh, Ww = window_size
    rch = np.arange(-(Wh - 1), Wh, dtype=np.float32)
    rcw = np.arange(-(Ww - 1), Ww, dtype=np.float32)
    table = np.stack(np.meshgrid(rch, rcw, indexing="ij"))
    table = np.transpose(table, (1, 2, 0))[None].copy()                 # (1,2Wh-1,2Ww-1,2)
    if pretrained_window_size[0] > 0:
        table[..., 0] /= pretrained_window_size[0] - 1
        table[..., 1] /= pretrained_window_size[1] - 1
    else:
        table[..., 0] /= Wh - 1
        table[..., 1] /= Ww - 1
    table *= 8
    table = np.sign(table) * np.log2(np.abs(table) + 1.0) / np.log2(8)
    return table.astype(np.float32)


def _relative_position_bias(params, window_size, num_heads):
    """cpb_mlp + gather + 16*sigmoid.  Parameter-only setup -> plain JAX glue."""
    Wh, Ww = window_size
    N = Wh * Ww
    table = jnp.asarray(_relative_coords_table(window_size)).reshape(-1, 2)
    hid = jnp.maximum(table @ params["cpb_w1"].T + params["cpb_b1"], 0.0)
    tab = hid @ params["cpb_w2"].T
    idx = jnp.asarray(_relative_position_index(window_size).reshape(-1))
    bias = tab[idx].reshape(N, N, num_heads).transpose(2, 0, 1)         # (nh, N, N)
    return 16.0 * jax.nn.sigmoid(bias)


# --------------------------------------------------------------------------- forward

def window_attention_res3_forward(x, prev_vals, params, cfg, mask=None):
    B_, N, C = x.shape
    nh = cfg["num_heads"]
    d = C // nh
    version = cfg["version"]
    L = 0 if prev_vals is None else prev_vals.shape[0]
    wb = _pick_wb(B_)

    # weights in (in, out) layout so the kernel does plain x @ w
    w3 = params["qkv_w"].reshape(3, C, C).transpose(0, 2, 1)            # (3, C, C)
    pw = params["proj_w"].T                                             # (C, C)
    pb = params["proj_b"].reshape(1, C)
    wts = params["wts"].astype(jnp.float32)                             # attn_act = Identity

    # per-head exp(clamp(logit_scale, max=log(1/0.01))), expanded per channel column
    ls = jnp.exp(jnp.minimum(params["logit_scale"].reshape(nh), jnp.log(1.0 / 0.01)))
    ls_row = jnp.repeat(ls, d).reshape(1, C)

    # relative-position bias, mask and the softmax exp-shift folded into a single
    # head-blocked table:  bm[t, q, h*N+k] = bias_h[q,k] + mask_t[q,k] - (ls_h + 16).
    # Since bias = 16*sigmoid < 16, |cos| <= 1 and mask <= 0, shifted logits are < 0
    # (no overflow) and the unmasked diagonal keeps the denominator >= exp(-16).
    rel_bias = _relative_position_bias(params, cfg["window_size"], nh)  # (nh, N, N)
    bias_big = rel_bias.transpose(1, 0, 2).reshape(N, nh * N)           # (N, nh*N)
    shift = jnp.repeat(ls, N).reshape(1, nh * N) + 16.0
    if mask is None:
        bm = (bias_big - shift)[None]                                   # (1, N, nh*N)
    else:
        # Contract: B_ is flattened with the window index innermost (standard Swin),
        # so window b uses mask[b % nW].
        assert B_ % mask.shape[0] == 0
        bm = bias_big[None] + jnp.tile(mask.astype(jnp.float32), (1, 1, nh)) - shift[None]
    nT = bm.shape[0]

    # resident constants: block-diag head matrix and the 0/1 head-selection mask
    ar = np.arange(C)
    hblk = jnp.asarray((ar[:, None] // d == ar[None, :] // d).astype(np.float32))   # (C, C)
    rows_h = np.arange(nh * N) // N
    hm = jnp.asarray((ar[None, :] // d == rows_h[:, None]).astype(np.float32))      # (nh*N, C)

    prev_nc = None
    if L > 0:
        # TODO(synk): in a full model, thread the residual stack in (L, B_, N, C) layout
        # end-to-end so this (and the final all_vals transpose) disappear.
        prev_nc = prev_vals.transpose(0, 1, 3, 2, 4).reshape(L, B_, N, C)

    kernel = _make_fused_kernel(version, L, nh, d, wb, N, nT)

    in_specs = [pl.BlockSpec(memory_space=pltpu.MemorySpace.SMEM),      # wts
                pl.BlockSpec((wb, N, C), lambda g: (g, 0, 0))]          # x
    args = [wts, x]
    if L > 0:
        in_specs.append(pl.BlockSpec((L, wb, N, C), lambda g: (0, g, 0, 0)))
        args.append(prev_nc)
    in_specs += [pl.BlockSpec((3, C, C), lambda g: (0, 0, 0)),          # qkv weight (resident)
                 pl.BlockSpec((C, C), lambda g: (0, 0)),                # proj weight (resident)
                 pl.BlockSpec((1, C), lambda g: (0, 0)),                # proj bias
                 pl.BlockSpec((1, C), lambda g: (0, 0)),                # logit-scale row
                 pl.BlockSpec((C, C), lambda g: (0, 0)),                # head block-diag
                 pl.BlockSpec((nh * N, C), lambda g: (0, 0)),           # head mask
                 pl.BlockSpec((nT, N, nh * N), lambda g: (0, 0, 0))]    # bias+mask-shift
    args += [w3, pw, pb, ls_row, hblk, hm, bm]

    out, cur_nc = pl.pallas_call(
        kernel,
        out_shape=(jax.ShapeDtypeStruct((B_, N, C), jnp.float32),
                   jax.ShapeDtypeStruct((B_, N, C), jnp.float32)),
        grid=(B_ // wb,),
        in_specs=in_specs,
        out_specs=(pl.BlockSpec((wb, N, C), lambda g: (g, 0, 0)),
                   pl.BlockSpec((wb, N, C), lambda g: (g, 0, 0))),
        compiler_params=pltpu.CompilerParams(dimension_semantics=("parallel",)),
    )(*args)

    # all_vals kept in the module's (L+1, B_, nh, N, d) API layout
    cur = cur_nc.reshape(B_, N, nh, d).transpose(0, 2, 1, 3)            # (B_, nh, N, d)
    all_vals = cur[None] if prev_vals is None else jnp.concatenate([prev_vals, cur[None]], 0)
    # attn_drop / proj_drop have p=0.0 -> identity in eval.
    return out, all_vals


# ------------------------------------------------------------------ pure-JAX reference

def reference_forward(x, prev_vals, params, cfg, mask=None):
    B_, N, C = x.shape
    nh = cfg["num_heads"]
    d = C // nh
    version = cfg["version"]

    qkv = x.reshape(B_ * N, C) @ params["qkv_w"].T
    qkv = qkv.reshape(B_, N, 3, nh, d).transpose(2, 0, 3, 1, 4)
    q, k, v = qkv[0], qkv[1], qkv[2]

    cur = {"Q": q, "K": k, "V": v}[version]
    all_vals = cur[None] if prev_vals is None else jnp.concatenate([prev_vals, cur[None]], 0)
    combined = (params["wts"].reshape(-1, 1, 1, 1, 1) * all_vals).sum(0)
    if version == "Q":
        q = combined
    elif version == "K":
        k = combined
    else:
        v = combined

    def normalize(t):
        return t / jnp.maximum(jnp.linalg.norm(t, axis=-1, keepdims=True), 1e-12)

    attn = normalize(q) @ jnp.swapaxes(normalize(k), -2, -1)
    ls = jnp.exp(jnp.minimum(params["logit_scale"], jnp.log(1.0 / 0.01)))
    attn = attn * ls[None]
    attn = attn + _relative_position_bias(params, cfg["window_size"], nh)[None]
    if mask is not None:
        nW = mask.shape[0]
        attn = attn.reshape(B_ // nW, nW, nh, N, N) + mask[None, :, None]
        attn = attn.reshape(B_, nh, N, N)
    attn = jax.nn.softmax(attn, axis=-1)
    out = (attn @ v).transpose(0, 2, 1, 3).reshape(B_, N, C)
    out = out @ params["proj_w"].T + params["proj_b"]
    return out, all_vals


# ----------------------------------------------------------------------------- main

if __name__ == "__main__":
    key = jax.random.PRNGKey(0)

    # module config (small shapes consistent with the forward)
    dim = 32
    num_heads = 4
    head_dim = dim // num_heads
    window_size = (8, 8)
    N = window_size[0] * window_size[1]       # 64 tokens per window
    B_ = 4                                    # num_windows * batch
    layer_idx = 1                             # prev_vals holds `layer_idx` stacked tensors
    cfg = {"version": "V", "num_heads": num_heads, "window_size": window_size}

    ks = jax.random.split(key, 10)
    params = {
        # attn_init='uniform' in [0.2, 0.8]; attn_act = Identity
        "wts": jax.random.uniform(ks[0], (layer_idx + 1,), jnp.float32, 0.2, 0.8),
        "logit_scale": jnp.log(10.0 * jnp.ones((num_heads, 1, 1), jnp.float32)),
        "qkv_w": 0.05 * jax.random.normal(ks[1], (3 * dim, dim), jnp.float32),
        "proj_w": 0.05 * jax.random.normal(ks[2], (dim, dim), jnp.float32),
        "proj_b": 0.01 * jax.random.normal(ks[3], (dim,), jnp.float32),
        "cpb_w1": 0.05 * jax.random.normal(ks[4], (512, 2), jnp.float32),
        "cpb_b1": 0.01 * jax.random.normal(ks[5], (512,), jnp.float32),
        "cpb_w2": 0.05 * jax.random.normal(ks[6], (num_heads, 512), jnp.float32),
    }

    x = jax.random.normal(ks[7], (B_, N, dim), jnp.float32)
    prev_vals = jax.random.normal(ks[8], (layer_idx, B_, num_heads, N, head_dim), jnp.float32)

    # tolerances: all_vals is produced by an f32 matmul (tight); the attention output
    # uses bf16 MXU operands + approx reciprocal (per perf review), so it is compared
    # with a relaxed tolerance.
    TOL_VALS = dict(rtol=2e-3, atol=2e-3)
    TOL_OUT = dict(rtol=2e-2, atol=1e-2)

    # ---- no-mask path (compiles the mask-free kernel variant) ----
    out, all_vals = window_attention_res3_forward(x, prev_vals, params, cfg, mask=None)
    out = jax.block_until_ready(out)
    all_vals = jax.block_until_ready(all_vals)

    ref_out, ref_all = reference_forward(x, prev_vals, params, cfg, mask=None)
    np.testing.assert_allclose(np.asarray(all_vals), np.asarray(ref_all), **TOL_VALS)
    np.testing.assert_allclose(np.asarray(out), np.asarray(ref_out), **TOL_OUT)

    # ---- shifted-window (masked) path ----
    nW = 2
    mask_np = np.zeros((nW, N, N), np.float32)
    mask_np[1, : N // 2, N // 2:] = -100.0
    mask_np[1, N // 2:, : N // 2] = -100.0
    mask = jnp.asarray(mask_np)

    out_m, _ = window_attention_res3_forward(x, prev_vals, params, cfg, mask=mask)
    out_m = jax.block_until_ready(out_m)
    ref_m, _ = reference_forward(x, prev_vals, params, cfg, mask=mask)
    np.testing.assert_allclose(np.asarray(out_m), np.asarray(ref_m), **TOL_OUT)

    print("KERNEL_OK")
</pallas_src>

<mosaic_0001>
module attributes {stable_mosaic.version = 11 : i64} {
  func.func @kernel(%arg0: i32, %arg1: memref<2xf32, #tpu.memory_space<smem>>, %arg2: memref<2x64x32xf32, #tpu.memory_space<vmem>>, %arg3: memref<1x2x64x32xf32, #tpu.memory_space<vmem>>, %arg4: memref<3x32x32xf32, #tpu.memory_space<vmem>>, %arg5: memref<32x32xf32, #tpu.memory_space<vmem>>, %arg6: memref<1x32xf32, #tpu.memory_space<vmem>>, %arg7: memref<1x32xf32, #tpu.memory_space<vmem>>, %arg8: memref<32x32xf32, #tpu.memory_space<vmem>>, %arg9: memref<256x32xf32, #tpu.memory_space<vmem>>, %arg10: memref<1x64x256xf32, #tpu.memory_space<vmem>>, %arg11: memref<2x64x32xf32, #tpu.memory_space<vmem>>, %arg12: memref<2x64x32xf32, #tpu.memory_space<vmem>>) attributes {dimension_semantics = [#tpu.dimension_semantics<parallel>], iteration_bounds = array<i64: 2>, scalar_prefetch = 0 : i64, scratch_operands = 0 : i64, tpu.core_type = #tpu.core_type<tc>, window_params = [{transform_indices = @transform_0, window_bounds = array<i64: 2>}, {transform_indices = @transform_1, window_bounds = array<i64: 2, 64, 32>}, {transform_indices = @transform_2, window_bounds = array<i64: 1, 2, 64, 32>}, {pipeline_mode = #tpu.pipeline_mode<synchronous>, transform_indices = @transform_3, window_bounds = array<i64: 3, 32, 32>}, {pipeline_mode = #tpu.pipeline_mode<synchronous>, transform_indices = @transform_4, window_bounds = array<i64: 32, 32>}, {pipeline_mode = #tpu.pipeline_mode<synchronous>, transform_indices = @transform_5, window_bounds = array<i64: 1, 32>}, {pipeline_mode = #tpu.pipeline_mode<synchronous>, transform_indices = @transform_6, window_bounds = array<i64: 1, 32>}, {pipeline_mode = #tpu.pipeline_mode<synchronous>, transform_indices = @transform_7, window_bounds = array<i64: 32, 32>}, {pipeline_mode = #tpu.pipeline_mode<synchronous>, transform_indices = @transform_8, window_bounds = array<i64: 256, 32>}, {pipeline_mode = #tpu.pipeline_mode<synchronous>, transform_indices = @transform_9, window_bounds = array<i64: 1, 64, 256>}, {transform_indices = @transform_10, window_bounds = array<i64: 2, 64, 32>}, {transform_indices = @transform_11, window_bounds = array<i64: 2, 64, 32>}]} {
    %c0 = arith.constant 0 : index
    %c0_0 = arith.constant 0 : index
    %c0_1 = arith.constant 0 : index
    %0 = vector.load %arg2[%c0, %c0_0, %c0_1] : memref<2x64x32xf32, #tpu.memory_space<vmem>>, vector<2x64x32xf32>
    %1 = vector.shape_cast %0 : vector<2x64x32xf32> to vector<128x32xf32>
    %c0_2 = arith.constant 0 : index
    %c0_3 = arith.constant 0 : index
    %c0_4 = arith.constant 0 : index
    %2 = vector.load %arg4[%c0_2, %c0_3, %c0_4] : memref<3x32x32xf32, #tpu.memory_space<vmem>>, vector<1x32x32xf32>
    %3 = vector.shape_cast %2 : vector<1x32x32xf32> to vector<32x32xf32>
    %cst = arith.constant dense<0.000000e+00> : vector<128x32xf32>
    %4 = tpu.matmul %1, %3, %cst {dimension_numbers = #tpu.dot_dimension_numbers<[1], [0], [0], [1], [0, 0, 1, 1], [], []>} : vector<128x32xf32>, vector<32x32xf32>, vector<128x32xf32> -> vector<128x32xf32>
    %c1 = arith.constant 1 : index
    %c0_5 = arith.constant 0 : index
    %c0_6 = arith.constant 0 : index
    %5 = vector.load %arg4[%c1, %c0_5, %c0_6] : memref<3x32x32xf32, #tpu.memory_space<vmem>>, vector<1x32x32xf32>
    %6 = vector.shape_cast %5 : vector<1x32x32xf32> to vector<32x32xf32>
    %cst_7 = arith.constant dense<0.000000e+00> : vector<128x32xf32>
    %7 = tpu.matmul %1, %6, %cst_7 {dimension_numbers = #tpu.dot_dimension_numbers<[1], [0], [0], [1], [0, 0, 1, 1], [], []>} : vector<128x32xf32>, vector<32x32xf32>, vector<128x32xf32> -> vector<128x32xf32>
    %c2 = arith.constant 2 : index
    %c0_8 = arith.constant 0 : index
    %c0_9 = arith.constant 0 : index
    %8 = vector.load %arg4[%c2, %c0_8, %c0_9] : memref<3x32x32xf32, #tpu.memory_space<vmem>>, vector<1x32x32xf32>
    %9 = vector.shape_cast %8 : vector<1x32x32xf32> to vector<32x32xf32>
    %cst_10 = arith.constant dense<0.000000e+00> : vector<128x32xf32>
    %10 = tpu.matmul %1, %9, %cst_10 {dimension_numbers = #tpu.dot_dimension_numbers<[1], [0], [0], [1], [0, 0, 1, 1], [], []>} : vector<128x32xf32>, vector<32x32xf32>, vector<128x32xf32> -> vector<128x32xf32>
    %11 = vector.shape_cast %10 : vector<128x32xf32> to vector<2x64x32xf32>
    %c0_11 = arith.constant 0 : index
    %c0_12 = arith.constant 0 : index
    %c0_13 = arith.constant 0 : index
    %12 = vector.load %arg12[%c0_11, %c0_12, %c0_13] : memref<2x64x32xf32, #tpu.memory_space<vmem>>, vector<2x64x32xf32>
    tpu.vector_store %arg12[%c0_11, %c0_12, %c0_13], %11 {strides = array<i32>} : memref<2x64x32xf32, #tpu.memory_space<vmem>>, vector<2x64x32xf32>,
    %c1_14 = arith.constant 1 : index
    %13 = memref.load %arg1[%c1_14] : memref<2xf32, #tpu.memory_space<smem>>
    %14 = vector.broadcast %13 : f32 to vector<128x32xf32>
    %15 = arith.mulf %14, %10 : vector<128x32xf32>
    %c0_15 = arith.constant 0 : index
    %16 = memref.load %arg1[%c0_15] : memref<2xf32, #tpu.memory_space<smem>>
    %c0_16 = arith.constant 0 : index
    %c0_17 = arith.constant 0 : index
    %c0_18 = arith.constant 0 : index
    %c0_19 = arith.constant 0 : index
    %17 = vector.load %arg3[%c0_16, %c0_17, %c0_18, %c0_19] : memref<1x2x64x32xf32, #tpu.memory_space<vmem>>, vector<1x2x64x32xf32>
    %18 = vector.shape_cast %17 : vector<1x2x64x32xf32> to vector<2x64x32xf32>
    %19 = vector.shape_cast %18 : vector<2x64x32xf32> to vector<128x32xf32>
    %20 = vector.broadcast %16 : f32 to vector<128x32xf32>
    %21 = arith.mulf %20, %19 : vector<128x32xf32>
    %22 = arith.addf %15, %21 : vector<128x32xf32>
    %c0_20 = arith.constant 0 : index
    %c0_21 = arith.constant 0 : index
    %23 = vector.load %arg8[%c0_20, %c0_21] : memref<32x32xf32, #tpu.memory_space<vmem>>, vector<32x32xf32>
    %24 = arith.mulf %4, %4 : vector<128x32xf32>
    %cst_22 = arith.constant dense<0.000000e+00> : vector<128x32xf32>
    %25 = tpu.matmul %24, %23, %cst_22 {dimension_numbers = #tpu.dot_dimension_numbers<[1], [0], [0], [1], [0, 0, 1, 1], [], []>} : vector<128x32xf32>, vector<32x32xf32>, vector<128x32xf32> -> vector<128x32xf32>
    %cst_23 = arith.constant 1.000000e-24 : f32
    %26 = vector.broadcast %cst_23 : f32 to vector<128x32xf32>
    %27 = arith.maximumf %25, %26 : vector<128x32xf32>
    %28 = math.rsqrt %27 : vector<128x32xf32>
    %29 = arith.mulf %4, %28 : vector<128x32xf32>
    %c0_24 = arith.constant 0 : index
    %c0_25 = arith.constant 0 : index
    %30 = vector.load %arg7[%c0_24, %c0_25] : memref<1x32xf32, #tpu.memory_space<vmem>>, vector<1x32xf32>
    %31 = vector.broadcast %30 : vector<1x32xf32> to vector<128x32xf32>
    %32 = arith.mulf %29, %31 : vector<128x32xf32>
    %33 = arith.mulf %7, %7 : vector<128x32xf32>
    %cst_26 = arith.constant dense<0.000000e+00> : vector<128x32xf32>
    %34 = tpu.matmul %33, %23, %cst_26 {dimension_numbers = #tpu.dot_dimension_numbers<[1], [0], [0], [1], [0, 0, 1, 1], [], []>} : vector<128x32xf32>, vector<32x32xf32>, vector<128x32xf32> -> vector<128x32xf32>
    %cst_27 = arith.constant 1.000000e-24 : f32
    %35 = vector.broadcast %cst_27 : f32 to vector<128x32xf32>
    %36 = arith.maximumf %34, %35 : vector<128x32xf32>
    %37 = math.rsqrt %36 : vector<128x32xf32>
    %38 = arith.mulf %7, %37 : vector<128x32xf32>
    %c0_28 = arith.constant 0 : index
    %c0_29 = arith.constant 0 : index
    %39 = vector.load %arg9[%c0_28, %c0_29] : memref<256x32xf32, #tpu.memory_space<vmem>>, vector<256x32xf32>
    %40 = arith.truncf %39 : vector<256x32xf32> to vector<256x32xbf16>
    %41 = vector.extract_strided_slice %32 {offsets = [0, 0], sizes = [64, 32], strides = [1, 1]} : vector<128x32xf32> to vector<64x32xf32>
    %42 = arith.truncf %41 : vector<64x32xf32> to vector<64x32xbf16>
    %43 = vector.extract_strided_slice %38 {offsets = [0, 0], sizes = [64, 32], strides = [1, 1]} : vector<128x32xf32> to vector<64x32xf32>
    %44 = tpu.concatenate %43, %43, %43, %43 in 0 : vector<64x32xf32>, vector<64x32xf32>, vector<64x32xf32>, vector<64x32xf32> -> vector<256x32xf32>
    %45 = arith.mulf %44, %39 : vector<256x32xf32>
    %46 = arith.truncf %45 : vector<256x32xf32> to vector<256x32xbf16>
    %47 = vector.extract_strided_slice %22 {offsets = [0, 0], sizes = [64, 32], strides = [1, 1]} : vector<128x32xf32> to vector<64x32xf32>
    %48 = tpu.concatenate %47, %47, %47, %47 in 0 : vector<64x32xf32>, vector<64x32xf32>, vector<64x32xf32>, vector<64x32xf32> -> vector<256x32xf32>
    %49 = arith.mulf %48, %39 : vector<256x32xf32>
    %50 = arith.truncf %49 : vector<256x32xf32> to vector<256x32xbf16>
    %cst_30 = arith.constant dense<0.000000e+00> : vector<64x256xf32>
    %51 = tpu.matmul %42, %46, %cst_30 {dimension_numbers = #tpu.dot_dimension_numbers<[1], [1], [0], [0], [0, 0, 1, 0], [], []>} : vector<64x32xbf16>, vector<256x32xbf16>, vector<64x256xf32> -> vector<64x256xf32>
    %c0_31 = arith.constant 0 : index
    %c0_32 = arith.constant 0 : index
    %c0_33 = arith.constant 0 : index
    %52 = vector.load %arg10[%c0_31, %c0_32, %c0_33] : memref<1x64x256xf32, #tpu.memory_space<vmem>>, vector<1x64x256xf32>
    %53 = vector.shape_cast %52 : vector<1x64x256xf32> to vector<64x256xf32>
    %54 = arith.addf %51, %53 : vector<64x256xf32>
    %55 = math.exp %54 : vector<64x256xf32>
    %56 = arith.truncf %55 : vector<64x256xf32> to vector<64x256xbf16>
    %cst_34 = arith.constant dense<0.000000e+00> : vector<64x32xf32>
    %57 = tpu.matmul %56, %50, %cst_34 {dimension_numbers = #tpu.dot_dimension_numbers<[1], [0], [0], [1], [0, 0, 1, 1], [], []>} : vector<64x256xbf16>, vector<256x32xbf16>, vector<64x32xf32> -> vector<64x32xf32>
    %cst_35 = arith.constant dense<0.000000e+00> : vector<64x32xf32>
    %58 = tpu.matmul %56, %40, %cst_35 {dimension_numbers = #tpu.dot_dimension_numbers<[1], [0], [0], [1], [0, 0, 1, 1], [], []>} : vector<64x256xbf16>, vector<256x32xbf16>, vector<64x32xf32> -> vector<64x32xf32>
    %59 = tpu.reciprocal %58 {approx = true} : vector<64x32xf32> -> vector<64x32xf32>
    %60 = arith.mulf %57, %59 : vector<64x32xf32>
    %61 = vector.extract_strided_slice %32 {offsets = [64, 0], sizes = [64, 32], strides = [1, 1]} : vector<128x32xf32> to vector<64x32xf32>
    %62 = arith.truncf %61 : vector<64x32xf32> to vector<64x32xbf16>
    %63 = vector.extract_strided_slice %38 {offsets = [64, 0], sizes = [64, 32], strides = [1, 1]} : vector<128x32xf32> to vector<64x32xf32>
    %64 = tpu.concatenate %63, %63, %63, %63 in 0 : vector<64x32xf32>, vector<64x32xf32>, vector<64x32xf32>, vector<64x32xf32> -> vector<256x32xf32>
    %65 = arith.mulf %64, %39 : vector<256x32xf32>
    %66 = arith.truncf %65 : vector<256x32xf32> to vector<256x32xbf16>
    %67 = vector.extract_strided_slice %22 {offsets = [64, 0], sizes = [64, 32], strides = [1, 1]} : vector<128x32xf32> to vector<64x32xf32>
    %68 = tpu.concatenate %67, %67, %67, %67 in 0 : vector<64x32xf32>, vector<64x32xf32>, vector<64x32xf32>, vector<64x32xf32> -> vector<256x32xf32>
    %69 = arith.mulf %68, %39 : vector<256x32xf32>
    %70 = arith.truncf %69 : vector<256x32xf32> to vector<256x32xbf16>
    %cst_36 = arith.constant dense<0.000000e+00> : vector<64x256xf32>
    %71 = tpu.matmul %62, %66, %cst_36 {dimension_numbers = #tpu.dot_dimension_numbers<[1], [1], [0], [0], [0, 0, 1, 0], [], []>} : vector<64x32xbf16>, vector<256x32xbf16>, vector<64x256xf32> -> vector<64x256xf32>
    %c0_37 = arith.constant 0 : index
    %c0_38 = arith.constant 0 : index
    %c0_39 = arith.constant 0 : index
    %72 = vector.load %arg10[%c0_37, %c0_38, %c0_39] : memref<1x64x256xf32, #tpu.memory_space<vmem>>, vector<1x64x256xf32>
    %73 = vector.shape_cast %72 : vector<1x64x256xf32> to vector<64x256xf32>
    %74 = arith.addf %71, %73 : vector<64x256xf32>
    %75 = math.exp %74 : vector<64x256xf32>
    %76 = arith.truncf %75 : vector<64x256xf32> to vector<64x256xbf16>
    %cst_40 = arith.constant dense<0.000000e+00> : vector<64x32xf32>
    %77 = tpu.matmul %76, %70, %cst_40 {dimension_numbers = #tpu.dot_dimension_numbers<[1], [0], [0], [1], [0, 0, 1, 1], [], []>} : vector<64x256xbf16>, vector<256x32xbf16>, vector<64x32xf32> -> vector<64x32xf32>
    %cst_41 = arith.constant dense<0.000000e+00> : vector<64x32xf32>
    %78 = tpu.matmul %76, %40, %cst_41 {dimension_numbers = #tpu.dot_dimension_numbers<[1], [0], [0], [1], [0, 0, 1, 1], [], []>} : vector<64x256xbf16>, vector<256x32xbf16>, vector<64x32xf32> -> vector<64x32xf32>
    %79 = tpu.reciprocal %78 {approx = true} : vector<64x32xf32> -> vector<64x32xf32>
    %80 = arith.mulf %77, %79 : vector<64x32xf32>
    %81 = tpu.concatenate %60, %80 in 0 : vector<64x32xf32>, vector<64x32xf32> -> vector<128x32xf32>
    %c0_42 = arith.constant 0 : index
    %c0_43 = arith.constant 0 : index
    %82 = vector.load %arg5[%c0_42, %c0_43] : memref<32x32xf32, #tpu.memory_space<vmem>>, vector<32x32xf32>
    %cst_44 = arith.constant dense<0.000000e+00> : vector<128x32xf32>
    %83 = tpu.matmul %81, %82, %cst_44 {dimension_numbers = #tpu.dot_dimension_numbers<[1], [0], [0], [1], [0, 0, 1, 1], [], []>} : vector<128x32xf32>, vector<32x32xf32>, vector<128x32xf32> -> vector<128x32xf32>
    %c0_45 = arith.constant 0 : index
    %c0_46 = arith.constant 0 : index
    %84 = vector.load %arg6[%c0_45, %c0_46] : memref<1x32xf32, #tpu.memory_space<vmem>>, vector<1x32xf32>
    %85 = vector.broadcast %84 : vector<1x32xf32> to vector<128x32xf32>
    %86 = arith.addf %83, %85 : vector<128x32xf32>
    %87 = vector.shape_cast %86 : vector<128x32xf32> to vector<2x64x32xf32>
    %c0_47 = arith.constant 0 : index
    %c0_48 = arith.constant 0 : index
    %c0_49 = arith.constant 0 : index
    %88 = vector.load %arg11[%c0_47, %c0_48, %c0_49] : memref<2x64x32xf32, #tpu.memory_space<vmem>>, vector<2x64x32xf32>
    tpu.vector_store %arg11[%c0_47, %c0_48, %c0_49], %87 {strides = array<i32>} : memref<2x64x32xf32, #tpu.memory_space<vmem>>, vector<2x64x32xf32>,
    return
  }
  func.func @transform_0(%arg0: i32) -> i32 {
    %c0_i32 = arith.constant 0 : i32
    %c0_i32_0 = arith.constant 0 : i32
    return %c0_i32 : i32
  }
  func.func @transform_1(%arg0: i32) -> (i32, i32, i32) {
    %c0_i32 = arith.constant 0 : i32
    %c0_i32_0 = arith.constant 0 : i32
    %c0_i32_1 = arith.constant 0 : i32
    return %arg0, %c0_i32, %c0_i32_0 : i32, i32, i32
  }
  func.func @transform_2(%arg0: i32) -> (i32, i32, i32, i32) {
    %c0_i32 = arith.constant 0 : i32
    %c0_i32_0 = arith.constant 0 : i32
    %c0_i32_1 = arith.constant 0 : i32
    %c0_i32_2 = arith.constant 0 : i32
    return %c0_i32, %arg0, %c0_i32_0, %c0_i32_1 : i32, i32, i32, i32
  }
  func.func @transform_3(%arg0: i32) -> (i32, i32, i32) {
    %c0_i32 = arith.constant 0 : i32
    %c0_i32_0 = arith.constant 0 : i32
    %c0_i32_1 = arith.constant 0 : i32
    %c0_i32_2 = arith.constant 0 : i32
    return %c0_i32, %c0_i32_0, %c0_i32_1 : i32, i32, i32
  }
  func.func @transform_4(%arg0: i32) -> (i32, i32) {
    %c0_i32 = arith.constant 0 : i32
    %c0_i32_0 = arith.constant 0 : i32
    %c0_i32_1 = arith.constant 0 : i32
    return %c0_i32, %c0_i32_0 : i32, i32
  }
  func.func @transform_5(%arg0: i32) -> (i32, i32) {
    %c0_i32 = arith.constant 0 : i32
    %c0_i32_0 = arith.constant 0 : i32
    %c0_i32_1 = arith.constant 0 : i32
    return %c0_i32, %c0_i32_0 : i32, i32
  }
  func.func @transform_6(%arg0: i32) -> (i32, i32) {
    %c0_i32 = arith.constant 0 : i32
    %c0_i32_0 = arith.constant 0 : i32
    %c0_i32_1 = arith.constant 0 : i32
    return %c0_i32, %c0_i32_0 : i32, i32
  }
  func.func @transform_7(%arg0: i32) -> (i32, i32) {
    %c0_i32 = arith.constant 0 : i32
    %c0_i32_0 = arith.constant 0 : i32
    %c0_i32_1 = arith.constant 0 : i32
    return %c0_i32, %c0_i32_0 : i32, i32
  }
  func.func @transform_8(%arg0: i32) -> (i32, i32) {
    %c0_i32 = arith.constant 0 : i32
    %c0_i32_0 = arith.constant 0 : i32
    %c0_i32_1 = arith.constant 0 : i32
    return %c0_i32, %c0_i32_0 : i32, i32
  }
  func.func @transform_9(%arg0: i32) -> (i32, i32, i32) {
    %c0_i32 = arith.constant 0 : i32
    %c0_i32_0 = arith.constant 0 : i32
    %c0_i32_1 = arith.constant 0 : i32
    %c0_i32_2 = arith.constant 0 : i32
    return %c0_i32, %c0_i32_0, %c0_i32_1 : i32, i32, i32
  }
  func.func @transform_10(%arg0: i32) -> (i32, i32, i32) {
    %c0_i32 = arith.constant 0 : i32
    %c0_i32_0 = arith.constant 0 : i32
    %c0_i32_1 = arith.constant 0 : i32
    return %arg0, %c0_i32, %c0_i32_0 : i32, i32, i32
  }
  func.func @transform_11(%arg0: i32) -> (i32, i32, i32) {
    %c0_i32 = arith.constant 0 : i32
    %c0_i32_0 = arith.constant 0 : i32
    %c0_i32_1 = arith.constant 0 : i32
    return %arg0, %c0_i32, %c0_i32_0 : i32, i32, i32
  }
}

</mosaic_0001>

<llo_original>
// kernel: tpu_custom_call.1
$region0: #{tpu_custom_call.1}
  #allocation0 [shape = 'u32[]', space=smem, size = 0x4, offset = 0x4, fixed_abs, tag = 'smem constant byte address 0x4 - core index']
  #allocation1 [shape = 'u32[144,128]{1,0:T(1,128)}', space=vmem, size = 0x12000, scoped, tag = 'internal scratch']
  %s0 = inlined_call_operand.vmem [shape: f32[2], index: 0, kind: input, shape index: {}]
  %s1 = inlined_call_operand.vmem [shape: f32[4,64,32], index: 1, kind: input, shape index: {}]
  %s2 = inlined_call_operand.vmem [shape: f32[1,4,64,32], index: 2, kind: input, shape index: {}]
  %s3 = inlined_call_operand.vmem [shape: f32[3,32,32], index: 3, kind: input, shape index: {}]
  %s4 = inlined_call_operand.vmem [shape: f32[32,32], index: 4, kind: input, shape index: {}]
  %s5 = inlined_call_operand.vmem [shape: f32[1,32], index: 5, kind: input, shape index: {}]
  %s6 = inlined_call_operand.vmem [shape: f32[1,32], index: 6, kind: input, shape index: {}]
  %s7 = inlined_call_operand.vmem [shape: f32[32,32], index: 7, kind: input, shape index: {}]
  %s8 = inlined_call_operand.vmem [shape: f32[256,32], index: 8, kind: input, shape index: {}]
  %s9 = inlined_call_operand.vmem [shape: f32[1,64,256], index: 9, kind: input, shape index: {}]
  %s10 = inlined_call_operand.vmem [shape: f32[4,64,32], index: 10, kind: output, shape index: {0}]
  %s11 = inlined_call_operand.vmem [shape: f32[4,64,32], index: 11, kind: output, shape index: {1}]
  %12 = xla_tuple %s10, %s11
  %s13 = sld [smem:[#allocation0]]
  $region85: #{tpu_custom_call.1} parent=0
    _
  %s15 = ssub.s32 1, %s13
  %s16 = scalar_select 0, %s15, %s13
  $region1: #{tpu_custom_call.1} parent=0
    #allocation2 [shape = 'u8[512]{0}', space=smem, size = 0x200, scoped, tag = 'input window, operand 0, single buffered']
    #allocation3 [shape = 's32[2]{0}', space=sflag, size = 0x8, scoped, tag = 'scoped memory for tpu_custom_call.1']
    %17 = vsyncpa [#allocation3], 0
    loop: start=0, step=1, limit=4
    $region2: #{tpu_custom_call.1} parent=1 // loop_pre_header
      _
    $region3: #{tpu_custom_call.1} parent=1 // loop_header
      %s19 = sphi 0, %s23
      %p20 = scmp.ge.s32.totalorder %s19, 4
      %s27 = sphi 0, %s27
      %s29 = sphi 0, %s27
      %s30 = sphi 0, %s29
      %s44 = sphi 0, %s30
      %s50 = sphi 0, %s52
      %s53 = sphi 0, %s50
      %s54 = sphi 0, %s53
      %s70 = sphi 0, %s54
      %s76 = sphi 0, %s78
      %s79 = sphi 0, %s76
      %s80 = sphi 0, %s79
      %s96 = sphi 0, %s80
      %s100 = sphi 0, %s100
      %s102 = sphi 0, %s100
      %s103 = sphi 0, %s102
      %s117 = sphi 0, %s103
      %s121 = sphi 0, %s121
      %s123 = sphi 0, %s121
      %s124 = sphi 0, %s123
      %s138 = sphi 0, %s124
      %s142 = sphi 0, %s142
      %s144 = sphi 0, %s142
      %s145 = sphi 0, %s144
      %s159 = sphi 0, %s145
      %s163 = sphi 0, %s163
      %s165 = sphi 0, %s163
      %s166 = sphi 0, %s165
      %s180 = sphi 0, %s166
      %s184 = sphi 0, %s184
      %s186 = sphi 0, %s184
      %s187 = sphi 0, %s186
      %s201 = sphi 0, %s187
      %s205 = sphi 0, %s205
      %s207 = sphi 0, %s205
      %s208 = sphi 0, %s207
      %s222 = sphi 0, %s208
      %s226 = sphi 0, %s226
      %s228 = sphi 0, %s226
      %s229 = sphi 0, %s228
      %s243 = sphi 0, %s229
      %s249 = sphi 0, %s251
      %s252 = sphi 0, %s249
      %s253 = sphi 0, %s252
      %s269 = sphi 0, %s253
      %s275 = sphi 0, %s277
      %s278 = sphi 0, %s275
      %s279 = sphi 0, %s278
      %s295 = sphi 0, %s279
    $region4: #{tpu_custom_call.1} parent=1 // loop_header_branch
      %22 = sbr.rel (%p20) target = $region8
    $region5: #{tpu_custom_call.1} parent=1 // loop_body
      %s24 = ssub.s32 %s19, 1
      %s25 = ssub.s32 %s19, 2
      %s26 = sadd.s32 %s19, 1
      %s28 = sadd.s32 %s27, 1
      %p31 = scmp.eq.s32.totalorder %s19, 1
      %p32 = scmp.ne.s32.totalorder %s27, %s29
      %p33 = scmp.eq.s32.totalorder %s19, 0
      %p34 = por %p32, %p33
      %p35 = scmp.ne.s32.totalorder %s27, %s29
      %p36 = scmp.eq.s32.totalorder %s24, 1
      %p37 = por %p35, %p36
      %p38 = scmp.ne.s32.totalorder %s29, %s30
      %p39 = scmp.eq.s32.totalorder %s24, 0
      %p40 = por %p38, %p39
      %p41 = scmp.ne.s32.totalorder %s29, %s30
      %p42 = scmp.eq.s32.totalorder %s25, 1
      %p43 = por %p41, %p42
      %p45 = scmp.ne.s32.totalorder %s30, %s44
      %p46 = scmp.eq.s32.totalorder %s25, 0
      %p47 = por %p45, %p46
      %s48 = ssub.s32 %s19, %s26
      %p49 = scmp.eq.s32.totalorder %s48, 0
      %s51 = sadd.s32 %s50, 1
      %s52 = scalar_select %p49, %s50, %s51
      %p55 = pneg %p49
      %p56 = scmp.eq.s32.totalorder %s19, 1
      %p57 = por %p55, %p56
      %p58 = scmp.ne.s32.totalorder %s50, %s53
      %p59 = scmp.eq.s32.totalorder %s19, 0
      %p60 = por %p58, %p59
      %p61 = scmp.ne.s32.totalorder %s50, %s53
      %p62 = scmp.eq.s32.totalorder %s24, 1
      %p63 = por %p61, %p62
      %p64 = scmp.ne.s32.totalorder %s53, %s54
      %p65 = scmp.eq.s32.totalorder %s24, 0
      %p66 = por %p64, %p65
      %p67 = scmp.ne.s32.totalorder %s53, %s54
      %p68 = scmp.eq.s32.totalorder %s25, 1
      %p69 = por %p67, %p68
      %p71 = scmp.ne.s32.totalorder %s54, %s70
      %p72 = scmp.eq.s32.totalorder %s25, 0
      %p73 = por %p71, %p72
      %s74 = ssub.s32 %s19, %s26
      %p75 = scmp.eq.s32.totalorder %s74, 0
      %s77 = sadd.s32 %s76, 1
      %s78 = scalar_select %p75, %s76, %s77
      %p81 = pneg %p75
      %p82 = scmp.eq.s32.totalorder %s19, 1
      %p83 = por %p81, %p82
      %p84 = scmp.ne.s32.totalorder %s76, %s79
      %p85 = scmp.eq.s32.totalorder %s19, 0
      %p86 = por %p84, %p85
      %p87 = scmp.ne.s32.totalorder %s76, %s79
      %p88 = scmp.eq.s32.totalorder %s24, 1
      %p89 = por %p87, %p88
      %p90 = scmp.ne.s32.totalorder %s79, %s80
      %p91 = scmp.eq.s32.totalorder %s24, 0
      %p92 = por %p90, %p91
      %p93 = scmp.ne.s32.totalorder %s79, %s80
      %p94 = scmp.eq.s32.totalorder %s25, 1
      %p95 = por %p93, %p94
      %p97 = scmp.ne.s32.totalorder %s80, %s96
      %p98 = scmp.eq.s32.totalorder %s25, 0
      %p99 = por %p97, %p98
      %s101 = sadd.s32 %s100, 1
      %p104 = scmp.eq.s32.totalorder %s19, 1
      %p105 = scmp.ne.s32.totalorder %s100, %s102
      %p106 = scmp.eq.s32.totalorder %s19, 0
      %p107 = por %p105, %p106
      %p108 = scmp.ne.s32.totalorder %s100, %s102
      %p109 = scmp.eq.s32.totalorder %s24, 1
      %p110 = por %p108, %p109
      %p111 = scmp.ne.s32.totalorder %s102, %s103
      %p112 = scmp.eq.s32.totalorder %s24, 0
      %p113 = por %p111, %p112
      %p114 = scmp.ne.s32.totalorder %s102, %s103
      %p115 = scmp.eq.s32.totalorder %s25, 1
      %p116 = por %p114, %p115
      %p118 = scmp.ne.s32.totalorder %s103, %s117
      %p119 = scmp.eq.s32.totalorder %s25, 0
      %p120 = por %p118, %p119
      %s122 = sadd.s32 %s121, 1
      %p125 = scmp.eq.s32.totalorder %s19, 1
      %p126 = scmp.ne.s32.totalorder %s121, %s123
      %p127 = scmp.eq.s32.totalorder %s19, 0
      %p128 = por %p126, %p127
      %p129 = scmp.ne.s32.totalorder %s121, %s123
      %p130 = scmp.eq.s32.totalorder %s24, 1
      %p131 = por %p129, %p130
      %p132 = scmp.ne.s32.totalorder %s123, %s124
      %p133 = scmp.eq.s32.totalorder %s24, 0
      %p134 = por %p132, %p133
      %p135 = scmp.ne.s32.totalorder %s123, %s124
      %p136 = scmp.eq.s32.totalorder %s25, 1
      %p137 = por %p135, %p136
      %p139 = scmp.ne.s32.totalorder %s124, %s138
      %p140 = scmp.eq.s32.totalorder %s25, 0
      %p141 = por %p139, %p140
      %s143 = sadd.s32 %s142, 1
      %p146 = scmp.eq.s32.totalorder %s19, 1
      %p147 = scmp.ne.s32.totalorder %s142, %s144
      %p148 = scmp.eq.s32.totalorder %s19, 0
      %p149 = por %p147, %p148
      %p150 = scmp.ne.s32.totalorder %s142, %s144
      %p151 = scmp.eq.s32.totalorder %s24, 1
      %p152 = por %p150, %p151
      %p153 = scmp.ne.s32.totalorder %s144, %s145
      %p154 = scmp.eq.s32.totalorder %s24, 0
      %p155 = por %p153, %p154
      %p156 = scmp.ne.s32.totalorder %s144, %s145
      %p157 = scmp.eq.s32.totalorder %s25, 1
      %p158 = por %p156, %p157
      %p160 = scmp.ne.s32.totalorder %s145, %s159
      %p161 = scmp.eq.s32.totalorder %s25, 0
      %p162 = por %p160, %p161
      %s164 = sadd.s32 %s163, 1
      %p167 = scmp.eq.s32.totalorder %s19, 1
      %p168 = scmp.ne.s32.totalorder %s163, %s165
      %p169 = scmp.eq.s32.totalorder %s19, 0
      %p170 = por %p168, %p169
      %p171 = scmp.ne.s32.totalorder %s163, %s165
      %p172 = scmp.eq.s32.totalorder %s24, 1
      %p173 = por %p171, %p172
      %p174 = scmp.ne.s32.totalorder %s165, %s166
      %p175 = scmp.eq.s32.totalorder %s24, 0
      %p176 = por %p174, %p175
      %p177 = scmp.ne.s32.totalorder %s165, %s166
      %p178 = scmp.eq.s32.totalorder %s25, 1
      %p179 = por %p177, %p178
      %p181 = scmp.ne.s32.totalorder %s166, %s180
      %p182 = scmp.eq.s32.totalorder %s25, 0
      %p183 = por %p181, %p182
      %s185 = sadd.s32 %s184, 1
      %p188 = scmp.eq.s32.totalorder %s19, 1
      %p189 = scmp.ne.s32.totalorder %s184, %s186
      %p190 = scmp.eq.s32.totalorder %s19, 0
      %p191 = por %p189, %p190
      %p192 = scmp.ne.s32.totalorder %s184, %s186
      %p193 = scmp.eq.s32.totalorder %s24, 1
      %p194 = por %p192, %p193
      %p195 = scmp.ne.s32.totalorder %s186, %s187
      %p196 = scmp.eq.s32.totalorder %s24, 0
      %p197 = por %p195, %p196
      %p198 = scmp.ne.s32.totalorder %s186, %s187
      %p199 = scmp.eq.s32.totalorder %s25, 1
      %p200 = por %p198, %p199
      %p202 = scmp.ne.s32.totalorder %s187, %s201
      %p203 = scmp.eq.s32.totalorder %s25, 0
      %p204 = por %p202, %p203
      %s206 = sadd.s32 %s205, 1
      %p209 = scmp.eq.s32.totalorder %s19, 1
      %p210 = scmp.ne.s32.totalorder %s205, %s207
      %p211 = scmp.eq.s32.totalorder %s19, 0
      %p212 = por %p210, %p211
      %p213 = scmp.ne.s32.totalorder %s205, %s207
      %p214 = scmp.eq.s32.totalorder %s24, 1
      %p215 = por %p213, %p214
      %p216 = scmp.ne.s32.totalorder %s207, %s208
      %p217 = scmp.eq.s32.totalorder %s24, 0
      %p218 = por %p216, %p217
      %p219 = scmp.ne.s32.totalorder %s207, %s208
      %p220 = scmp.eq.s32.totalorder %s25, 1
      %p221 = por %p219, %p220
      %p223 = scmp.ne.s32.totalorder %s208, %s222
      %p224 = scmp.eq.s32.totalorder %s25, 0
      %p225 = por %p223, %p224
      %s227 = sadd.s32 %s226, 1
      %p230 = scmp.eq.s32.totalorder %s19, 1
      %p231 = scmp.ne.s32.totalorder %s226, %s228
      %p232 = scmp.eq.s32.totalorder %s19, 0
      %p233 = por %p231, %p232
      %p234 = scmp.ne.s32.totalorder %s226, %s228
      %p235 = scmp.eq.s32.totalorder %s24, 1
      %p236 = por %p234, %p235
      %p237 = scmp.ne.s32.totalorder %s228, %s229
      %p238 = scmp.eq.s32.totalorder %s24, 0
      %p239 = por %p237, %p238
      %p240 = scmp.ne.s32.totalorder %s228, %s229
      %p241 = scmp.eq.s32.totalorder %s25, 1
      %p242 = por %p240, %p241
      %p244 = scmp.ne.s32.totalorder %s229, %s243
      %p245 = scmp.eq.s32.totalorder %s25, 0
      %p246 = por %p244, %p245
      %s247 = ssub.s32 %s19, %s26
      %p248 = scmp.eq.s32.totalorder %s247, 0
      %s250 = sadd.s32 %s249, 1
      %s251 = scalar_select %p248, %s249, %s250
      %p254 = pneg %p248
      %p255 = scmp.eq.s32.totalorder %s19, 1
      %p256 = por %p254, %p255
      %p257 = scmp.ne.s32.totalorder %s249, %s252
      %p258 = scmp.eq.s32.totalorder %s19, 0
      %p259 = por %p257, %p258
      %p260 = scmp.ne.s32.totalorder %s249, %s252
      %p261 = scmp.eq.s32.totalorder %s24, 1
      %p262 = por %p260, %p261
      %p263 = scmp.ne.s32.totalorder %s252, %s253
      %p264 = scmp.eq.s32.totalorder %s24, 0
      %p265 = por %p263, %p264
      %p266 = scmp.ne.s32.totalorder %s252, %s253
      %p267 = scmp.eq.s32.totalorder %s25, 1
      %p268 = por %p266, %p267
      %p270 = scmp.ne.s32.totalorder %s253, %s269
      %p271 = scmp.eq.s32.totalorder %s25, 0
      %p272 = por %p270, %p271
      %s273 = ssub.s32 %s19, %s26
      %p274 = scmp.eq.s32.totalorder %s273, 0
      %s276 = sadd.s32 %s275, 1
      %s277 = scalar_select %p274, %s275, %s276
      %p280 = pneg %p274
      %p281 = scmp.eq.s32.totalorder %s19, 1
      %p282 = por %p280, %p281
      %p283 = scmp.ne.s32.totalorder %s275, %s278
      %p284 = scmp.eq.s32.totalorder %s19, 0
      %p285 = por %p283, %p284
      %p286 = scmp.ne.s32.totalorder %s275, %s278
      %p287 = scmp.eq.s32.totalorder %s24, 1
      %p288 = por %p286, %p287
      %p289 = scmp.ne.s32.totalorder %s278, %s279
      %p290 = scmp.eq.s32.totalorder %s24, 0
      %p291 = por %p289, %p290
      %p292 = scmp.ne.s32.totalorder %s278, %s279
      %p293 = scmp.eq.s32.totalorder %s25, 1
      %p294 = por %p292, %p293
      %p296 = scmp.ne.s32.totalorder %s279, %s295
      %p297 = scmp.eq.s32.totalorder %s25, 0
      %p298 = por %p296, %p297
      %p299 = scmp.le.s32.totalorder 1, %s19
      %p300 = scmp.lt.s32.totalorder %s19, 3
      %p301 = pnand %p299, %p300
      %p302 = pneg %p301
      // Predicated region
      $region9: #{tpu_custom_call.1} parent=5 // pred_check
        _
      $region10: #{tpu_custom_call.1} parent=5 // pred_check_branch
        %304 = sbr.rel (%p301) target = $region12
      $region11: #{tpu_custom_call.1} parent=5 // pred_region
        %s305 = ssub.s32 %s19, 1
        // Predicated region
        $region13: #{tpu_custom_call.1} parent=11 // pred_check
          %p306 = pneg %p40
        $region14: #{tpu_custom_call.1} parent=11 // pred_check_branch
          %308 = sbr.rel (%p306) target = $region16
        $region15: #{tpu_custom_call.1} parent=11 // pred_region
          %s310 = ssub.s32 16, 16
          %311 = vsyncadd [#allocation3], %s310
          %s313 = sshll.u32 %s0, 4
          %s314 = int_to_ptr.vmem [resolvable:$true] %s313
          %316 = dma.vmem_to_smem %s314, 16, [#allocation2], [#allocation3]
        $region16: #{tpu_custom_call.1} parent=11 // pred_fallthru
          _
        // Predicated region
        $region17: #{tpu_custom_call.1} parent=11 // pred_check
          %p317 = pneg %p113
        $region18: #{tpu_custom_call.1} parent=11 // pred_check_branch
          %319 = sbr.rel (%p317) target = $region20
        $region19: #{tpu_custom_call.1} parent=11 // pred_region
          _
        $region20: #{tpu_custom_call.1} parent=11 // pred_fallthru
          _
        // Predicated region
        $region21: #{tpu_custom_call.1} parent=11 // pred_check
          %p320 = pneg %p134
        $region22: #{tpu_custom_call.1} parent=11 // pred_check_branch
          %322 = sbr.rel (%p320) target = $region24
        $region23: #{tpu_custom_call.1} parent=11 // pred_region
          _
        $region24: #{tpu_custom_call.1} parent=11 // pred_fallthru
          _
        // Predicated region
        $region25: #{tpu_custom_call.1} parent=11 // pred_check
          %p323 = pneg %p155
        $region26: #{tpu_custom_call.1} parent=11 // pred_check_branch
          %325 = sbr.rel (%p323) target = $region28
        $region27: #{tpu_custom_call.1} parent=11 // pred_region
          _
        $region28: #{tpu_custom_call.1} parent=11 // pred_fallthru
          _
        // Predicated region
        $region29: #{tpu_custom_call.1} parent=11 // pred_check
          %p326 = pneg %p176
        $region30: #{tpu_custom_call.1} parent=11 // pred_check_branch
          %328 = sbr.rel (%p326) target = $region32
        $region31: #{tpu_custom_call.1} parent=11 // pred_region
          _
        $region32: #{tpu_custom_call.1} parent=11 // pred_fallthru
          _
        // Predicated region
        $region33: #{tpu_custom_call.1} parent=11 // pred_check
          %p329 = pneg %p197
        $region34: #{tpu_custom_call.1} parent=11 // pred_check_branch
          %331 = sbr.rel (%p329) target = $region36
        $region35: #{tpu_custom_call.1} parent=11 // pred_region
          _
        $region36: #{tpu_custom_call.1} parent=11 // pred_fallthru
          _
        // Predicated region
        $region37: #{tpu_custom_call.1} parent=11 // pred_check
          %p332 = pneg %p218
        $region38: #{tpu_custom_call.1} parent=11 // pred_check_branch
          %334 = sbr.rel (%p332) target = $region40
        $region39: #{tpu_custom_call.1} parent=11 // pred_region
          _
        $region40: #{tpu_custom_call.1} parent=11 // pred_fallthru
          _
        // Predicated region
        $region41: #{tpu_custom_call.1} parent=11 // pred_check
          %p335 = pneg %p239
        $region42: #{tpu_custom_call.1} parent=11 // pred_check_branch
          %337 = sbr.rel (%p335) target = $region44
        $region43: #{tpu_custom_call.1} parent=11 // pred_region
          _
        $region44: #{tpu_custom_call.1} parent=11 // pred_fallthru
          _
      $region12: #{tpu_custom_call.1} parent=5 // pred_fallthru
        _
      %p338 = scmp.lt.s32.totalorder %s19, 2
      // Predicated region
      $region45: #{tpu_custom_call.1} parent=5 // pred_check
        %p339 = pneg %p338
      $region46: #{tpu_custom_call.1} parent=5 // pred_check_branch
        %341 = sbr.rel (%p339) target = $region48
      $region47: #{tpu_custom_call.1} parent=5 // pred_region
        // Predicated region
        $region49: #{tpu_custom_call.1} parent=47 // pred_check
          %p342 = pneg %p60
        $region50: #{tpu_custom_call.1} parent=47 // pred_check_branch
          %344 = sbr.rel (%p342) target = $region52
        $region51: #{tpu_custom_call.1} parent=47 // pred_region
          %s345 = smul.u32 2, %s19
          %p346 = scmp.lt.s32.totalorder %s345, 3
          %s347 = scalar_select %p346, %s345, 3
          %s348 = smul.addr %s347, 8
          %s349 = smul.addr %s348, 8
          %s350 = scalar_lea.vmem %s1, %s349
          %s351 = smul.u32 2, %s19
        $region52: #{tpu_custom_call.1} parent=47 // pred_fallthru
          _
        // Predicated region
        $region53: #{tpu_custom_call.1} parent=47 // pred_check
          %p352 = pneg %p86
        $region54: #{tpu_custom_call.1} parent=47 // pred_check_branch
          %354 = sbr.rel (%p352) target = $region56
        $region55: #{tpu_custom_call.1} parent=47 // pred_region
          %s355 = smul.u32 2, %s19
          %p356 = scmp.lt.s32.totalorder %s355, 3
          %s357 = scalar_select %p356, %s355, 3
          %s358 = smul.addr %s357, 8
          %s359 = smul.addr %s358, 8
          %s360 = scalar_lea.vmem %s2, %s359
          %s361 = smul.u32 2, %s19
        $region56: #{tpu_custom_call.1} parent=47 // pred_fallthru
          _
      $region48: #{tpu_custom_call.1} parent=5 // pred_fallthru
        _
      %p362 = scmp.le.s32.totalorder 1, %s19
      %p363 = scmp.lt.s32.totalorder %s19, 3
      %p364 = pnand %p362, %p363
      %p365 = pneg %p364
      // Predicated region
      $region57: #{tpu_custom_call.1} parent=5 // pred_check
        _
      $region58: #{tpu_custom_call.1} parent=5 // pred_check_branch
        %367 = sbr.rel (%p364) target = $region60
      $region59: #{tpu_custom_call.1} parent=5 // pred_region
        %s368 = ssub.s32 %s19, 1
        // Predicated region
        $region61: #{tpu_custom_call.1} parent=59 // pred_check
          %p369 = pneg %p40
        $region62: #{tpu_custom_call.1} parent=59 // pred_check_branch
          %371 = sbr.rel (%p369) target = $region64
        $region63: #{tpu_custom_call.1} parent=59 // pred_region
          %372 = dma.done [#allocation3], 16
        $region64: #{tpu_custom_call.1} parent=59 // pred_fallthru
          _
        %373 = sfence
        %p374 = pneg %p40
        %p375 = pneg %p37
        %s376 = smul.u32 2, %s24
        %p377 = scmp.lt.s32.totalorder %s376, 3
        %s378 = scalar_select %p377, %s376, 3
        %s379 = smul.addr %s378, 8
        %s380 = smul.addr %s379, 8
        %s381 = scalar_lea.vmem %s1, %s380
        %p382 = pneg %p66
        %p383 = pneg %p63
        %s384 = smul.u32 2, %s24
        %p385 = scmp.lt.s32.totalorder %s384, 3
        %s386 = scalar_select %p385, %s384, 3
        %s387 = smul.addr %s386, 8
        %s388 = smul.addr %s387, 8
        %s389 = scalar_lea.vmem %s2, %s388
        %p390 = pneg %p92
        %p391 = pneg %p89
        %p392 = pneg %p113
        %p393 = pneg %p110
        %p394 = pneg %p134
        %p395 = pneg %p131
        %p396 = pneg %p155
        %p397 = pneg %p152
        %p398 = pneg %p176
        %p399 = pneg %p173
        %p400 = pneg %p197
        %p401 = pneg %p194
        %p402 = pneg %p218
        %p403 = pneg %p215
        %p404 = pneg %p239
        %p405 = pneg %p236
        %p406 = pneg %p265
        %p407 = pneg %p262
        %s408 = smul.u32 2, %s24
        %p409 = scmp.lt.s32.totalorder %s408, 3
        %s410 = scalar_select %p409, %s408, 3
        %s411 = smul.addr %s410, 8
        %s412 = smul.addr %s411, 8
        %s413 = scalar_lea.vmem %s10, %s412
        %p414 = pneg %p291
        %p415 = pneg %p288
        %s416 = smul.u32 2, %s24
        %p417 = scmp.lt.s32.totalorder %s416, 3
        %s418 = scalar_select %p417, %s416, 3
        %s419 = smul.addr %s418, 8
        %s420 = smul.addr %s419, 8
        %s421 = scalar_lea.vmem %s11, %s420
        %s422 = smul.u32 2, %s24
        %p423 = scmp.lt.s32.totalorder %s422, 3
        %s424 = scalar_select %p423, %s422, 3
        %s425 = smul.addr %s424, 8
        %s426 = smul.addr %s425, 8
        %s427 = scalar_lea.vmem %s1, %s426
        %s428 = smul.u32 2, %s24
        %s429 = smul.u32 2, %s24
        %p430 = scmp.lt.s32.totalorder %s429, 3
        %s431 = scalar_select %p430, %s429, 3
        %s432 = smul.addr %s431, 8
        %s433 = smul.addr %s432, 8
        %s434 = scalar_lea.vmem %s2, %s433
        %s435 = smul.u32 2, %s24
        %s436 = smul.u32 2, %s24
        %p437 = scmp.lt.s32.totalorder %s436, 3
        %s438 = scalar_select %p437, %s436, 3
        %s439 = smul.addr %s438, 8
        %s440 = smul.addr %s439, 8
        %s441 = scalar_lea.vmem %s10, %s440
        %s442 = smul.u32 2, %s24
        %s443 = smul.u32 2, %s24
        %p444 = scmp.lt.s32.totalorder %s443, 3
        %s445 = scalar_select %p444, %s443, 3
        %s446 = smul.addr %s445, 8
        %s447 = smul.addr %s446, 8
        %s448 = scalar_lea.vmem %s11, %s447
        %s449 = smul.u32 2, %s24
        %v451 = vld [vmem:[%s427] sm:$0xff]
        %v452 = vld [vmem:[%s427 + $0x8] sm:$0xff]
        %v453 = vld [vmem:[%s427 + $0x10] sm:$0xff]
        %v454 = vld [vmem:[%s427 + $0x18] sm:$0xff]
        %v455 = vld [vmem:[%s427 + $0x20] sm:$0xff]
        %v456 = vld [vmem:[%s427 + $0x28] sm:$0xff]
        %v457 = vld [vmem:[%s427 + $0x30] sm:$0xff]
        %v458 = vld [vmem:[%s427 + $0x38] sm:$0xff]
        %v459 = vld [vmem:[%s427 + $0x40] sm:$0xff]
        %v460 = vld [vmem:[%s427 + $0x48] sm:$0xff]
        %v461 = vld [vmem:[%s427 + $0x50] sm:$0xff]
        %v462 = vld [vmem:[%s427 + $0x58] sm:$0xff]
        %v463 = vld [vmem:[%s427 + $0x60] sm:$0xff]
        %v464 = vld [vmem:[%s427 + $0x68] sm:$0xff]
        %v465 = vld [vmem:[%s427 + $0x70] sm:$0xff]
        %v466 = vld [vmem:[%s427 + $0x78] sm:$0xff]
        %v467 = vld [vmem:[%s3] sm:$0xff]
        %v468 = vld [vmem:[%s3 + $0x8] sm:$0xff]
        %v469 = vld [vmem:[%s3 + $0x10] sm:$0xff]
        %v470 = vld [vmem:[%s3 + $0x18] sm:$0xff]
        %vm471 = vcmask 261120
        %v473 = vsel %vm471, %v451, 0
        %v476 = vsel %vm471, %v452, 0
        %v479 = vsel %vm471, %v453, 0
        %v482 = vsel %vm471, %v454, 0
        %v485 = vsel %vm471, %v455, 0
        %v488 = vsel %vm471, %v456, 0
        %v491 = vsel %vm471, %v457, 0
        %v494 = vsel %vm471, %v458, 0
        %v497 = vsel %vm471, %v459, 0
        %v500 = vsel %vm471, %v460, 0
        %v503 = vsel %vm471, %v461, 0
        %v506 = vsel %vm471, %v462, 0
        %v509 = vsel %vm471, %v463, 0
        %v512 = vsel %vm471, %v464, 0
        %v515 = vsel %vm471, %v465, 0
        %v518 = vsel %vm471, %v466, 0
        %520 = vmatprep.subr.mxu0 0.0
        %521 = vmatpush1.msra.mxu0 %v467
        %522 = vmatprep.subr.mxu0 0.0
        %523 = vmatpush1.msra.mxu0 %v468
        %524 = vmatprep.subr.mxu0 0.0
        %525 = vmatpush1.msra.mxu0 %v469
        %526 = vmatprep.subr.mxu0 0.0
        %527 = vmatpush1.msra.mxu0 %v470
        %528 = vmatprep.subr.mxu0 0.0
        %529 = vmatpush1.msra.mxu0 0.0
        %530 = vmatprep.subr.mxu0 0.0
        %531 = vmatpush1.msra.mxu0 0.0
        %532 = vmatprep.subr.mxu0 0.0
        %533 = vmatpush1.msra.mxu0 0.0
        %534 = vmatprep.subr.mxu0 0.0
        %535 = vmatpush1.msra.mxu0 0.0
        %536 = vmatprep.subr.mxu0 0.0
        %537 = vmatpush1.msra.mxu0 0.0
        %538 = vmatprep.subr.mxu0 0.0
        %539 = vmatpush1.msra.mxu0 0.0
        %540 = vmatprep.subr.mxu0 0.0
        %541 = vmatpush1.msra.mxu0 0.0
        %542 = vmatprep.subr.mxu0 0.0
        %543 = vmatpush1.msra.mxu0 0.0
        %544 = vmatprep.subr.mxu0 0.0
        %545 = vmatpush1.msra.mxu0 0.0
        %546 = vmatprep.subr.mxu0 0.0
        %547 = vmatpush1.msra.mxu0 0.0
        %548 = vmatprep.subr.mxu0 0.0
        %549 = vmatpush1.msra.mxu0 0.0
        %550 = vmatprep.subr.mxu0 0.0
        %551 = vmatpush1.msra.mxu0 0.0
        %552 = vmatprep.subr.mxu0 0.0
        %553 = vmatpush1.msra.mxu0 0.0
        %554 = vmatprep.subr.mxu0 0.0
        %555 = vmatpush1.msra.mxu0 0.0
        %556 = vmatprep.subr.mxu0 0.0
        %557 = vmatpush1.msra.mxu0 0.0
        %558 = vmatprep.subr.mxu0 0.0
        %559 = vmatpush1.msra.mxu0 0.0
        %560 = vmatprep.subr.mxu0 0.0
        %561 = vmatpush1.msra.mxu0 0.0
        %562 = vmatprep.subr.mxu0 0.0
        %563 = vmatpush1.msra.mxu0 0.0
        %564 = vmatprep.subr.mxu0 0.0
        %565 = vmatpush1.msra.mxu0 0.0
        %566 = vmatprep.subr.mxu0 0.0
        %567 = vmatpush1.msra.mxu0 0.0
        %568 = vmatprep.subr.mxu0 0.0
        %569 = vmatpush1.msra.mxu0 0.0
        %570 = vmatprep.subr.mxu0 0.0
        %571 = vmatpush1.msra.mxu0 0.0
        %572 = vmatprep.subr.mxu0 0.0
        %573 = vmatpush1.msra.mxu0 0.0
        %574 = vmatprep.subr.mxu0 0.0
        %575 = vmatpush1.msra.mxu0 0.0
        %576 = vmatprep.subr.mxu0 0.0
        %577 = vmatpush1.msra.mxu0 0.0
        %578 = vmatprep.subr.mxu0 0.0
        %579 = vmatpush1.msra.mxu0 0.0
        %580 = vmatprep.subr.mxu0 0.0
        %581 = vmatpush1.msra.mxu0 0.0
        %582 = vmatprep.subr.mxu0 0.0
        %583 = vmatpush1.msra.mxu0 0.0
        %584 = vmatprep.mubr.f32.mxu0 0.0
        %585 = vmatmul.mubr.f32.gmra.mrb[0].mxu0 %v473
        %v586 = vpop.f32.mrb[0].mxu0
        %v587 = vadd.f32 0.0, %v586
        %v588 = vpop.f32.mrb[0].mxu0
        %589 = vmatprep.mubr.f32.mxu0 0.0
        %590 = vmatmul.mubr.f32.gmra.mrb[0].mxu0 %v476
        %v591 = vpop.f32.mrb[0].mxu0
        %v592 = vadd.f32 0.0, %v591
        %v593 = vpop.f32.mrb[0].mxu0
        %594 = vmatprep.mubr.f32.mxu0 0.0
        %595 = vmatmul.mubr.f32.gmra.mrb[0].mxu0 %v479
        %v596 = vpop.f32.mrb[0].mxu0
        %v597 = vadd.f32 0.0, %v596
        %v598 = vpop.f32.mrb[0].mxu0
        %599 = vmatprep.mubr.f32.mxu0 0.0
        %600 = vmatmul.mubr.f32.gmra.mrb[0].mxu0 %v482
        %v601 = vpop.f32.mrb[0].mxu0
        %v602 = vadd.f32 0.0, %v601
        %v603 = vpop.f32.mrb[0].mxu0
        %604 = vmatprep.mubr.f32.mxu0 0.0
        %605 = vmatmul.mubr.f32.gmra.mrb[0].mxu0 %v485
        %v606 = vpop.f32.mrb[0].mxu0
        %v607 = vadd.f32 0.0, %v606
        %v608 = vpop.f32.mrb[0].mxu0
        %609 = vmatprep.mubr.f32.mxu0 0.0
        %610 = vmatmul.mubr.f32.gmra.mrb[0].mxu0 %v488
        %v611 = vpop.f32.mrb[0].mxu0
        %v612 = vadd.f32 0.0, %v611
        %v613 = vpop.f32.mrb[0].mxu0
        %614 = vmatprep.mubr.f32.mxu0 0.0
        %615 = vmatmul.mubr.f32.gmra.mrb[0].mxu0 %v491
        %v616 = vpop.f32.mrb[0].mxu0
        %v617 = vadd.f32 0.0, %v616
        %v618 = vpop.f32.mrb[0].mxu0
        %619 = vmatprep.mubr.f32.mxu0 0.0
        %620 = vmatmul.mubr.f32.gmra.mrb[0].mxu0 %v494
        %v621 = vpop.f32.mrb[0].mxu0
        %v622 = vadd.f32 0.0, %v621
        %v623 = vpop.f32.mrb[0].mxu0
        %624 = vmatprep.mubr.f32.mxu0 0.0
        %625 = vmatmul.mubr.f32.gmra.mrb[0].mxu0 %v497
        %v626 = vpop.f32.mrb[0].mxu0
        %v627 = vadd.f32 0.0, %v626
        %v628 = vpop.f32.mrb[0].mxu0
        %629 = vmatprep.mubr.f32.mxu0 0.0
        %630 = vmatmul.mubr.f32.gmra.mrb[0].mxu0 %v500
        %v631 = vpop.f32.mrb[0].mxu0
        %v632 = vadd.f32 0.0, %v631
        %v633 = vpop.f32.mrb[0].mxu0
        %634 = vmatprep.mubr.f32.mxu0 0.0
        %635 = vmatmul.mubr.f32.gmra.mrb[0].mxu0 %v503
        %v636 = vpop.f32.mrb[0].mxu0
        %v637 = vadd.f32 0.0, %v636
        %v638 = vpop.f32.mrb[0].mxu0
        %639 = vmatprep.mubr.f32.mxu0 0.0
        %640 = vmatmul.mubr.f32.gmra.mrb[0].mxu0 %v506
        %v641 = vpop.f32.mrb[0].mxu0
        %v642 = vadd.f32 0.0, %v641
        %v643 = vpop.f32.mrb[0].mxu0
        %644 = vmatprep.mubr.f32.mxu0 0.0
        %645 = vmatmul.mubr.f32.gmra.mrb[0].mxu0 %v509
        %v646 = vpop.f32.mrb[0].mxu0
        %v647 = vadd.f32 0.0, %v646
        %v648 = vpop.f32.mrb[0].mxu0
        %649 = vmatprep.mubr.f32.mxu0 0.0
        %650 = vmatmul.mubr.f32.gmra.mrb[0].mxu0 %v512
        %v651 = vpop.f32.mrb[0].mxu0
        %v652 = vadd.f32 0.0, %v651
        %v653 = vpop.f32.mrb[0].mxu0
        %654 = vmatprep.mubr.f32.mxu0 0.0
        %655 = vmatmul.mubr.f32.gmra.mrb[0].mxu0 %v515
        %v656 = vpop.f32.mrb[0].mxu0
        %v657 = vadd.f32 0.0, %v656
        %v658 = vpop.f32.mrb[0].mxu0
        %659 = vmatprep.mubr.f32.mxu0 0.0
        %660 = vmatmul.mubr.f32.gmra.mrb[0].mxu0 %v518
        %v661 = vpop.f32.mrb[0].mxu0
        %v662 = vadd.f32 0.0, %v661
        %v663 = vpop.f32.mrb[0].mxu0
        %664 = vdwg.mxu0
        %s665 = scalar_lea.vmem %s3, 32
        %v666 = vld [vmem:[%s665] sm:$0xff]
        %v667 = vld [vmem:[%s665 + $0x8] sm:$0xff]
        %v668 = vld [vmem:[%s665 + $0x10] sm:$0xff]
        %v669 = vld [vmem:[%s665 + $0x18] sm:$0xff]
        %670 = vmatprep.subr.mxu0 0.0
        %671 = vmatpush1.msra.mxu0 %v666
        %672 = vmatprep.subr.mxu0 0.0
        %673 = vmatpush1.msra.mxu0 %v667
        %674 = vmatprep.subr.mxu0 0.0
        %675 = vmatpush1.msra.mxu0 %v668
        %676 = vmatprep.subr.mxu0 0.0
        %677 = vmatpush1.msra.mxu0 %v669
        %678 = vmatprep.subr.mxu0 0.0
        %679 = vmatpush1.msra.mxu0 0.0
        %680 = vmatprep.subr.mxu0 0.0
        %681 = vmatpush1.msra.mxu0 0.0
        %682 = vmatprep.subr.mxu0 0.0
        %683 = vmatpush1.msra.mxu0 0.0
        %684 = vmatprep.subr.mxu0 0.0
        %685 = vmatpush1.msra.mxu0 0.0
        %686 = vmatprep.subr.mxu0 0.0
        %687 = vmatpush1.msra.mxu0 0.0
        %688 = vmatprep.subr.mxu0 0.0
        %689 = vmatpush1.msra.mxu0 0.0
        %690 = vmatprep.subr.mxu0 0.0
        %691 = vmatpush1.msra.mxu0 0.0
        %692 = vmatprep.subr.mxu0 0.0
        %693 = vmatpush1.msra.mxu0 0.0
        %694 = vmatprep.subr.mxu0 0.0
        %695 = vmatpush1.msra.mxu0 0.0
        %696 = vmatprep.subr.mxu0 0.0
        %697 = vmatpush1.msra.mxu0 0.0
        %698 = vmatprep.subr.mxu0 0.0
        %699 = vmatpush1.msra.mxu0 0.0
        %700 = vmatprep.subr.mxu0 0.0
        %701 = vmatpush1.msra.mxu0 0.0
        %702 = vmatprep.subr.mxu0 0.0
        %703 = vmatpush1.msra.mxu0 0.0
        %704 = vmatprep.subr.mxu0 0.0
        %705 = vmatpush1.msra.mxu0 0.0
        %706 = vmatprep.subr.mxu0 0.0
        %707 = vmatpush1.msra.mxu0 0.0
        %708 = vmatprep.subr.mxu0 0.0
        %709 = vmatpush1.msra.mxu0 0.0
        %710 = vmatprep.subr.mxu0 0.0
        %711 = vmatpush1.msra.mxu0 0.0
        %712 = vmatprep.subr.mxu0 0.0
        %713 = vmatpush1.msra.mxu0 0.0
        %714 = vmatprep.subr.mxu0 0.0
        %715 = vmatpush1.msra.mxu0 0.0
        %716 = vmatprep.subr.mxu0 0.0
        %717 = vmatpush1.msra.mxu0 0.0
        %718 = vmatprep.subr.mxu0 0.0
        %719 = vmatpush1.msra.mxu0 0.0
        %720 = vmatprep.subr.mxu0 0.0
        %721 = vmatpush1.msra.mxu0 0.0
        %722 = vmatprep.subr.mxu0 0.0
        %723 = vmatpush1.msra.mxu0 0.0
        %724 = vmatprep.subr.mxu0 0.0
        %725 = vmatpush1.msra.mxu0 0.0
        %726 = vmatprep.subr.mxu0 0.0
        %727 = vmatpush1.msra.mxu0 0.0
        %728 = vmatprep.subr.mxu0 0.0
        %729 = vmatpush1.msra.mxu0 0.0
        %730 = vmatprep.subr.mxu0 0.0
        %731 = vmatpush1.msra.mxu0 0.0
        %732 = vmatprep.subr.mxu0 0.0
        %733 = vmatpush1.msra.mxu0 0.0
        %734 = vmatprep.mubr.f32.mxu0 0.0
        %735 = vmatmul.mubr.f32.gmra.mrb[0].mxu0 %v473
        %v736 = vpop.f32.mrb[0].mxu0
        %v737 = vadd.f32 0.0, %v736
        %v738 = vpop.f32.mrb[0].mxu0
        %739 = vmatprep.mubr.f32.mxu0 0.0
        %740 = vmatmul.mubr.f32.gmra.mrb[0].mxu0 %v476
        %v741 = vpop.f32.mrb[0].mxu0
        %v742 = vadd.f32 0.0, %v741
        %v743 = vpop.f32.mrb[0].mxu0
        %744 = vmatprep.mubr.f32.mxu0 0.0
        %745 = vmatmul.mubr.f32.gmra.mrb[0].mxu0 %v479
        %v746 = vpop.f32.mrb[0].mxu0
        %v747 = vadd.f32 0.0, %v746
        %v748 = vpop.f32.mrb[0].mxu0
        %749 = vmatprep.mubr.f32.mxu0 0.0
        %750 = vmatmul.mubr.f32.gmra.mrb[0].mxu0 %v482
        %v751 = vpop.f32.mrb[0].mxu0
        %v752 = vadd.f32 0.0, %v751
        %v753 = vpop.f32.mrb[0].mxu0
        %754 = vmatprep.mubr.f32.mxu0 0.0
        %755 = vmatmul.mubr.f32.gmra.mrb[0].mxu0 %v485
        %v756 = vpop.f32.mrb[0].mxu0
        %v757 = vadd.f32 0.0, %v756
        %v758 = vpop.f32.mrb[0].mxu0
        %759 = vmatprep.mubr.f32.mxu0 0.0
        %760 = vmatmul.mubr.f32.gmra.mrb[0].mxu0 %v488
        %v761 = vpop.f32.mrb[0].mxu0
        %v762 = vadd.f32 0.0, %v761
        %v763 = vpop.f32.mrb[0].mxu0
        %764 = vmatprep.mubr.f32.mxu0 0.0
        %765 = vmatmul.mubr.f32.gmra.mrb[0].mxu0 %v491
        %v766 = vpop.f32.mrb[0].mxu0
        %v767 = vadd.f32 0.0, %v766
        %v768 = vpop.f32.mrb[0].mxu0
        %769 = vmatprep.mubr.f32.mxu0 0.0
        %770 = vmatmul.mubr.f32.gmra.mrb[0].mxu0 %v494
        %v771 = vpop.f32.mrb[0].mxu0
        %v772 = vadd.f32 0.0, %v771
        %v773 = vpop.f32.mrb[0].mxu0
        %774 = vmatprep.mubr.f32.mxu0 0.0
        %775 = vmatmul.mubr.f32.gmra.mrb[0].mxu0 %v497
        %v776 = vpop.f32.mrb[0].mxu0
        %v777 = vadd.f32 0.0, %v776
        %v778 = vpop.f32.mrb[0].mxu0
        %779 = vmatprep.mubr.f32.mxu0 0.0
        %780 = vmatmul.mubr.f32.gmra.mrb[0].mxu0 %v500
        %v781 = vpop.f32.mrb[0].mxu0
        %v782 = vadd.f32 0.0, %v781
        %v783 = vpop.f32.mrb[0].mxu0
        %784 = vmatprep.mubr.f32.mxu0 0.0
        %785 = vmatmul.mubr.f32.gmra.mrb[0].mxu0 %v503
        %v786 = vpop.f32.mrb[0].mxu0
        %v787 = vadd.f32 0.0, %v786
        %v788 = vpop.f32.mrb[0].mxu0
        %789 = vmatprep.mubr.f32.mxu0 0.0
        %790 = vmatmul.mubr.f32.gmra.mrb[0].mxu0 %v506
        %v791 = vpop.f32.mrb[0].mxu0
        %v792 = vadd.f32 0.0, %v791
        %v793 = vpop.f32.mrb[0].mxu0
        %794 = vmatprep.mubr.f32.mxu0 0.0
        %795 = vmatmul.mubr.f32.gmra.mrb[0].mxu0 %v509
        %v796 = vpop.f32.mrb[0].mxu0
        %v797 = vadd.f32 0.0, %v796
        %v798 = vpop.f32.mrb[0].mxu0
        %799 = vmatprep.mubr.f32.mxu0 0.0
        %800 = vmatmul.mubr.f32.gmra.mrb[0].mxu0 %v512
        %v801 = vpop.f32.mrb[0].mxu0
        %v802 = vadd.f32 0.0, %v801
        %v803 = vpop.f32.mrb[0].mxu0
        %804 = vmatprep.mubr.f32.mxu0 0.0
        %805 = vmatmul.mubr.f32.gmra.mrb[0].mxu0 %v515
        %v806 = vpop.f32.mrb[0].mxu0
        %v807 = vadd.f32 0.0, %v806
        %v808 = vpop.f32.mrb[0].mxu0
        %809 = vmatprep.mubr.f32.mxu0 0.0
        %810 = vmatmul.mubr.f32.gmra.mrb[0].mxu0 %v518
        %v811 = vpop.f32.mrb[0].mxu0
        %v812 = vadd.f32 0.0, %v811
        %v813 = vpop.f32.mrb[0].mxu0
        %814 = vdwg.mxu0
        %s815 = scalar_lea.vmem %s3, 64
        %v816 = vld [vmem:[%s815] sm:$0xff]
        %v817 = vld [vmem:[%s815 + $0x8] sm:$0xff]
        %v818 = vld [vmem:[%s815 + $0x10] sm:$0xff]
        %v819 = vld [vmem:[%s815 + $0x18] sm:$0xff]
        %820 = vmatprep.subr.mxu0 0.0
        %821 = vmatpush1.msra.mxu0 %v816
        %822 = vmatprep.subr.mxu0 0.0
        %823 = vmatpush1.msra.mxu0 %v817
        %824 = vmatprep.subr.mxu0 0.0
        %825 = vmatpush1.msra.mxu0 %v818
        %826 = vmatprep.subr.mxu0 0.0
        %827 = vmatpush1.msra.mxu0 %v819
        %828 = vmatprep.subr.mxu0 0.0
        %829 = vmatpush1.msra.mxu0 0.0
        %830 = vmatprep.subr.mxu0 0.0
        %831 = vmatpush1.msra.mxu0 0.0
        %832 = vmatprep.subr.mxu0 0.0
        %833 = vmatpush1.msra.mxu0 0.0
        %834 = vmatprep.subr.mxu0 0.0
        %835 = vmatpush1.msra.mxu0 0.0
        %836 = vmatprep.subr.mxu0 0.0
        %837 = vmatpush1.msra.mxu0 0.0
        %838 = vmatprep.subr.mxu0 0.0
        %839 = vmatpush1.msra.mxu0 0.0
        %840 = vmatprep.subr.mxu0 0.0
        %841 = vmatpush1.msra.mxu0 0.0
        %842 = vmatprep.subr.mxu0 0.0
        %843 = vmatpush1.msra.mxu0 0.0
        %844 = vmatprep.subr.mxu0 0.0
        %845 = vmatpush1.msra.mxu0 0.0
        %846 = vmatprep.subr.mxu0 0.0
        %847 = vmatpush1.msra.mxu0 0.0
        %848 = vmatprep.subr.mxu0 0.0
        %849 = vmatpush1.msra.mxu0 0.0
        %850 = vmatprep.subr.mxu0 0.0
        %851 = vmatpush1.msra.mxu0 0.0
        %852 = vmatprep.subr.mxu0 0.0
        %853 = vmatpush1.msra.mxu0 0.0
        %854 = vmatprep.subr.mxu0 0.0
        %855 = vmatpush1.msra.mxu0 0.0
        %856 = vmatprep.subr.mxu0 0.0
        %857 = vmatpush1.msra.mxu0 0.0
        %858 = vmatprep.subr.mxu0 0.0
        %859 = vmatpush1.msra.mxu0 0.0
        %860 = vmatprep.subr.mxu0 0.0
        %861 = vmatpush1.msra.mxu0 0.0
        %862 = vmatprep.subr.mxu0 0.0
        %863 = vmatpush1.msra.mxu0 0.0
        %864 = vmatprep.subr.mxu0 0.0
        %865 = vmatpush1.msra.mxu0 0.0
        %866 = vmatprep.subr.mxu0 0.0
        %867 = vmatpush1.msra.mxu0 0.0
        %868 = vmatprep.subr.mxu0 0.0
        %869 = vmatpush1.msra.mxu0 0.0
        %870 = vmatprep.subr.mxu0 0.0
        %871 = vmatpush1.msra.mxu0 0.0
        %872 = vmatprep.subr.mxu0 0.0
        %873 = vmatpush1.msra.mxu0 0.0
        %874 = vmatprep.subr.mxu0 0.0
        %875 = vmatpush1.msra.mxu0 0.0
        %876 = vmatprep.subr.mxu0 0.0
        %877 = vmatpush1.msra.mxu0 0.0
        %878 = vmatprep.subr.mxu0 0.0
        %879 = vmatpush1.msra.mxu0 0.0
        %880 = vmatprep.subr.mxu0 0.0
        %881 = vmatpush1.msra.mxu0 0.0
        %882 = vmatprep.subr.mxu0 0.0
        %883 = vmatpush1.msra.mxu0 0.0
        %884 = vmatprep.mubr.f32.mxu0 0.0
        %885 = vmatmul.mubr.f32.gmra.mrb[0].mxu0 %v473
        %v886 = vpop.f32.mrb[0].mxu0
        %v887 = vadd.f32 0.0, %v886
        %v888 = vpop.f32.mrb[0].mxu0
        %889 = vmatprep.mubr.f32.mxu0 0.0
        %890 = vmatmul.mubr.f32.gmra.mrb[0].mxu0 %v476
        %v891 = vpop.f32.mrb[0].mxu0
        %v892 = vadd.f32 0.0, %v891
        %v893 = vpop.f32.mrb[0].mxu0
        %894 = vmatprep.mubr.f32.mxu0 0.0
        %895 = vmatmul.mubr.f32.gmra.mrb[0].mxu0 %v479
        %v896 = vpop.f32.mrb[0].mxu0
        %v897 = vadd.f32 0.0, %v896
        %v898 = vpop.f32.mrb[0].mxu0
        %899 = vmatprep.mubr.f32.mxu0 0.0
        %900 = vmatmul.mubr.f32.gmra.mrb[0].mxu0 %v482
        %v901 = vpop.f32.mrb[0].mxu0
        %v902 = vadd.f32 0.0, %v901
        %v903 = vpop.f32.mrb[0].mxu0
        %904 = vmatprep.mubr.f32.mxu0 0.0
        %905 = vmatmul.mubr.f32.gmra.mrb[0].mxu0 %v485
        %v906 = vpop.f32.mrb[0].mxu0
        %v907 = vadd.f32 0.0, %v906
        %v908 = vpop.f32.mrb[0].mxu0
        %909 = vmatprep.mubr.f32.mxu0 0.0
        %910 = vmatmul.mubr.f32.gmra.mrb[0].mxu0 %v488
        %v911 = vpop.f32.mrb[0].mxu0
        %v912 = vadd.f32 0.0, %v911
        %v913 = vpop.f32.mrb[0].mxu0
        %914 = vmatprep.mubr.f32.mxu0 0.0
        %915 = vmatmul.mubr.f32.gmra.mrb[0].mxu0 %v491
        %v916 = vpop.f32.mrb[0].mxu0
        %v917 = vadd.f32 0.0, %v916
        %v918 = vpop.f32.mrb[0].mxu0
        %919 = vmatprep.mubr.f32.mxu0 0.0
        %920 = vmatmul.mubr.f32.gmra.mrb[0].mxu0 %v494
        %v921 = vpop.f32.mrb[0].mxu0
        %v922 = vadd.f32 0.0, %v921
        %v923 = vpop.f32.mrb[0].mxu0
        %924 = vmatprep.mubr.f32.mxu0 0.0
        %925 = vmatmul.mubr.f32.gmra.mrb[0].mxu0 %v497
        %v926 = vpop.f32.mrb[0].mxu0
        %v927 = vadd.f32 0.0, %v926
        %v928 = vpop.f32.mrb[0].mxu0
        %929 = vmatprep.mubr.f32.mxu0 0.0
        %930 = vmatmul.mubr.f32.gmra.mrb[0].mxu0 %v500
        %v931 = vpop.f32.mrb[0].mxu0
        %v932 = vadd.f32 0.0, %v931
        %v933 = vpop.f32.mrb[0].mxu0
        %934 = vmatprep.mubr.f32.mxu0 0.0
        %935 = vmatmul.mubr.f32.gmra.mrb[0].mxu0 %v503
        %v936 = vpop.f32.mrb[0].mxu0
        %v937 = vadd.f32 0.0, %v936
        %v938 = vpop.f32.mrb[0].mxu0
        %939 = vmatprep.mubr.f32.mxu0 0.0
        %940 = vmatmul.mubr.f32.gmra.mrb[0].mxu0 %v506
        %v941 = vpop.f32.mrb[0].mxu0
        %v942 = vadd.f32 0.0, %v941
        %v943 = vpop.f32.mrb[0].mxu0
        %944 = vmatprep.mubr.f32.mxu0 0.0
        %945 = vmatmul.mubr.f32.gmra.mrb[0].mxu0 %v509
        %v946 = vpop.f32.mrb[0].mxu0
        %v947 = vadd.f32 0.0, %v946
        %v948 = vpop.f32.mrb[0].mxu0
        %949 = vmatprep.mubr.f32.mxu0 0.0
        %950 = vmatmul.mubr.f32.gmra.mrb[0].mxu0 %v512
        %v951 = vpop.f32.mrb[0].mxu0
        %v952 = vadd.f32 0.0, %v951
        %v953 = vpop.f32.mrb[0].mxu0
        %954 = vmatprep.mubr.f32.mxu0 0.0
        %955 = vmatmul.mubr.f32.gmra.mrb[0].mxu0 %v515
        %v956 = vpop.f32.mrb[0].mxu0
        %v957 = vadd.f32 0.0, %v956
        %v958 = vpop.f32.mrb[0].mxu0
        %959 = vmatprep.mubr.f32.mxu0 0.0
        %960 = vmatmul.mubr.f32.gmra.mrb[0].mxu0 %v518
        %v961 = vpop.f32.mrb[0].mxu0
        %v962 = vadd.f32 0.0, %v961
        %v963 = vpop.f32.mrb[0].mxu0
        %964 = vdwg.mxu0
        %965 = vst.msk [vmem:[%s448] sm:$0xff] %vm471, %v887
        %966 = vst.msk [vmem:[%s448 + $0x8] sm:$0xff] %vm471, %v892
        %967 = vst.msk [vmem:[%s448 + $0x10] sm:$0xff] %vm471, %v897
        %968 = vst.msk [vmem:[%s448 + $0x18] sm:$0xff] %vm471, %v902
        %969 = vst.msk [vmem:[%s448 + $0x20] sm:$0xff] %vm471, %v907
        %970 = vst.msk [vmem:[%s448 + $0x28] sm:$0xff] %vm471, %v912
        %971 = vst.msk [vmem:[%s448 + $0x30] sm:$0xff] %vm471, %v917
        %972 = vst.msk [vmem:[%s448 + $0x38] sm:$0xff] %vm471, %v922
        %973 = vst.msk [vmem:[%s448 + $0x40] sm:$0xff] %vm471, %v927
        %974 = vst.msk [vmem:[%s448 + $0x48] sm:$0xff] %vm471, %v932
        %975 = vst.msk [vmem:[%s448 + $0x50] sm:$0xff] %vm471, %v937
        %976 = vst.msk [vmem:[%s448 + $0x58] sm:$0xff] %vm471, %v942
        %977 = vst.msk [vmem:[%s448 + $0x60] sm:$0xff] %vm471, %v947
        %978 = vst.msk [vmem:[%s448 + $0x68] sm:$0xff] %vm471, %v952
        %979 = vst.msk [vmem:[%s448 + $0x70] sm:$0xff] %vm471, %v957
        %980 = vst.msk [vmem:[%s448 + $0x78] sm:$0xff] %vm471, %v962
        %s981 = sld [smem:[#allocation2 + $0x1]]
        %v982 = vstv %s981
        %v983 = vmul.f32 %v982, %v887
        %v984 = vmul.f32 %v982, %v892
        %v985 = vmul.f32 %v982, %v897
        %v986 = vmul.f32 %v982, %v902
        %v987 = vmul.f32 %v982, %v907
        %v988 = vmul.f32 %v982, %v912
        %v989 = vmul.f32 %v982, %v917
        %v990 = vmul.f32 %v982, %v922
        %v991 = vmul.f32 %v982, %v927
        %v992 = vmul.f32 %v982, %v932
        %v993 = vmul.f32 %v982, %v937
        %v994 = vmul.f32 %v982, %v942
        %v995 = vmul.f32 %v982, %v947
        %v996 = vmul.f32 %v982, %v952
        %v997 = vmul.f32 %v982, %v957
        %v998 = vmul.f32 %v982, %v962
        %s999 = sld [smem:[#allocation2]]
        %v1000 = vld [vmem:[%s434] sm:$0xff]
        %v1001 = vld [vmem:[%s434 + $0x8] sm:$0xff]
        %v1002 = vld [vmem:[%s434 + $0x10] sm:$0xff]
        %v1003 = vld [vmem:[%s434 + $0x18] sm:$0xff]
        %v1004 = vld [vmem:[%s434 + $0x20] sm:$0xff]
        %v1005 = vld [vmem:[%s434 + $0x28] sm:$0xff]
        %v1006 = vld [vmem:[%s434 + $0x30] sm:$0xff]
        %v1007 = vld [vmem:[%s434 + $0x38] sm:$0xff]
        %v1008 = vld [vmem:[%s434 + $0x40] sm:$0xff]
        %v1009 = vld [vmem:[%s434 + $0x48] sm:$0xff]
        %v1010 = vld [vmem:[%s434 + $0x50] sm:$0xff]
        %v1011 = vld [vmem:[%s434 + $0x58] sm:$0xff]
        %v1012 = vld [vmem:[%s434 + $0x60] sm:$0xff]
        %v1013 = vld [vmem:[%s434 + $0x68] sm:$0xff]
        %v1014 = vld [vmem:[%s434 + $0x70] sm:$0xff]
        %v1015 = vld [vmem:[%s434 + $0x78] sm:$0xff]
        %v1016 = vstv %s999
        %v1017 = vmul.f32 %v1016, %v1000
        %v1018 = vmul.f32 %v1016, %v1001
        %v1019 = vmul.f32 %v1016, %v1002
        %v1020 = vmul.f32 %v1016, %v1003
        %v1021 = vmul.f32 %v1016, %v1004
        %v1022 = vmul.f32 %v1016, %v1005
        %v1023 = vmul.f32 %v1016, %v1006
        %v1024 = vmul.f32 %v1016, %v1007
        %v1025 = vmul.f32 %v1016, %v1008
        %v1026 = vmul.f32 %v1016, %v1009
        %v1027 = vmul.f32 %v1016, %v1010
        %v1028 = vmul.f32 %v1016, %v1011
        %v1029 = vmul.f32 %v1016, %v1012
        %v1030 = vmul.f32 %v1016, %v1013
        %v1031 = vmul.f32 %v1016, %v1014
        %v1032 = vmul.f32 %v1016, %v1015
        %v1033 = vadd.f32 %v983, %v1017
        %v1034 = vadd.f32 %v984, %v1018
        %v1035 = vadd.f32 %v985, %v1019
        %v1036 = vadd.f32 %v986, %v1020
        %v1037 = vadd.f32 %v987, %v1021
        %v1038 = vadd.f32 %v988, %v1022
        %v1039 = vadd.f32 %v989, %v1023
        %v1040 = vadd.f32 %v990, %v1024
        %v1041 = vadd.f32 %v991, %v1025
        %v1042 = vadd.f32 %v992, %v1026
        %v1043 = vadd.f32 %v993, %v1027
        %v1044 = vadd.f32 %v994, %v1028
        %v1045 = vadd.f32 %v995, %v1029
        %v1046 = vadd.f32 %v996, %v1030
        %v1047 = vadd.f32 %v997, %v1031
        %v1048 = vadd.f32 %v998, %v1032
        %v1049 = vld [vmem:[%s7] sm:$0xff]
        %v1050 = vld [vmem:[%s7 + $0x8] sm:$0xff]
        %v1051 = vld [vmem:[%s7 + $0x10] sm:$0xff]
        %v1052 = vld [vmem:[%s7 + $0x18] sm:$0xff]
        %v1053 = vmul.f32 %v587, %v587
        %v1054 = vmul.f32 %v592, %v592
        %v1055 = vmul.f32 %v597, %v597
        %v1056 = vmul.f32 %v602, %v602
        %v1057 = vmul.f32 %v607, %v607
        %v1058 = vmul.f32 %v612, %v612
        %v1059 = vmul.f32 %v617, %v617
        %v1060 = vmul.f32 %v622, %v622
        %v1061 = vmul.f32 %v627, %v627
        %v1062 = vmul.f32 %v632, %v632
        %v1063 = vmul.f32 %v637, %v637
        %v1064 = vmul.f32 %v642, %v642
        %v1065 = vmul.f32 %v647, %v647
        %v1066 = vmul.f32 %v652, %v652
        %v1067 = vmul.f32 %v657, %v657
        %v1068 = vmul.f32 %v662, %v662
        %v1070 = vsel %vm471, %v1053, 0
        %v1073 = vsel %vm471, %v1054, 0
        %v1076 = vsel %vm471, %v1055, 0
        %v1079 = vsel %vm471, %v1056, 0
        %v1082 = vsel %vm471, %v1057, 0
        %v1085 = vsel %vm471, %v1058, 0
        %v1088 = vsel %vm471, %v1059, 0
        %v1091 = vsel %vm471, %v1060, 0
        %v1094 = vsel %vm471, %v1061, 0
        %v1097 = vsel %vm471, %v1062, 0
        %v1100 = vsel %vm471, %v1063, 0
        %v1103 = vsel %vm471, %v1064, 0
        %v1106 = vsel %vm471, %v1065, 0
        %v1109 = vsel %vm471, %v1066, 0
        %v1112 = vsel %vm471, %v1067, 0
        %v1115 = vsel %vm471, %v1068, 0
        %1117 = vmatprep.subr.mxu0 0.0
        %1118 = vmatpush1.msra.mxu0 %v1049
        %1119 = vmatprep.subr.mxu0 0.0
        %1120 = vmatpush1.msra.mxu0 %v1050
        %1121 = vmatprep.subr.mxu0 0.0
        %1122 = vmatpush1.msra.mxu0 %v1051
        %1123 = vmatprep.subr.mxu0 0.0
        %1124 = vmatpush1.msra.mxu0 %v1052
        %1125 = vmatprep.subr.mxu0 0.0
        %1126 = vmatpush1.msra.mxu0 0.0
        %1127 = vmatprep.subr.mxu0 0.0
        %1128 = vmatpush1.msra.mxu0 0.0
        %1129 = vmatprep.subr.mxu0 0.0
        %1130 = vmatpush1.msra.mxu0 0.0
        %1131 = vmatprep.subr.mxu0 0.0
        %1132 = vmatpush1.msra.mxu0 0.0
        %1133 = vmatprep.subr.mxu0 0.0
        %1134 = vmatpush1.msra.mxu0 0.0
        %1135 = vmatprep.subr.mxu0 0.0
        %1136 = vmatpush1.msra.mxu0 0.0
        %1137 = vmatprep.subr.mxu0 0.0
        %1138 = vmatpush1.msra.mxu0 0.0
        %1139 = vmatprep.subr.mxu0 0.0
        %1140 = vmatpush1.msra.mxu0 0.0
        %1141 = vmatprep.subr.mxu0 0.0
        %1142 = vmatpush1.msra.mxu0 0.0
        %1143 = vmatprep.subr.mxu0 0.0
        %1144 = vmatpush1.msra.mxu0 0.0
        %1145 = vmatprep.subr.mxu0 0.0
        %1146 = vmatpush1.msra.mxu0 0.0
        %1147 = vmatprep.subr.mxu0 0.0
        %1148 = vmatpush1.msra.mxu0 0.0
        %1149 = vmatprep.subr.mxu0 0.0
        %1150 = vmatpush1.msra.mxu0 0.0
        %1151 = vmatprep.subr.mxu0 0.0
        %1152 = vmatpush1.msra.mxu0 0.0
        %1153 = vmatprep.subr.mxu0 0.0
        %1154 = vmatpush1.msra.mxu0 0.0
        %1155 = vmatprep.subr.mxu0 0.0
        %1156 = vmatpush1.msra.mxu0 0.0
        %1157 = vmatprep.subr.mxu0 0.0
        %1158 = vmatpush1.msra.mxu0 0.0
        %1159 = vmatprep.subr.mxu0 0.0
        %1160 = vmatpush1.msra.mxu0 0.0
        %1161 = vmatprep.subr.mxu0 0.0
        %1162 = vmatpush1.msra.mxu0 0.0
        %1163 = vmatprep.subr.mxu0 0.0
        %1164 = vmatpush1.msra.mxu0 0.0
        %1165 = vmatprep.subr.mxu0 0.0
        %1166 = vmatpush1.msra.mxu0 0.0
        %1167 = vmatprep.subr.mxu0 0.0
        %1168 = vmatpush1.msra.mxu0 0.0
        %1169 = vmatprep.subr.mxu0 0.0
        %1170 = vmatpush1.msra.mxu0 0.0
        %1171 = vmatprep.subr.mxu0 0.0
        %1172 = vmatpush1.msra.mxu0 0.0
        %1173 = vmatprep.subr.mxu0 0.0
        %1174 = vmatpush1.msra.mxu0 0.0
        %1175 = vmatprep.subr.mxu0 0.0
        %1176 = vmatpush1.msra.mxu0 0.0
        %1177 = vmatprep.subr.mxu0 0.0
        %1178 = vmatpush1.msra.mxu0 0.0
        %1179 = vmatprep.subr.mxu0 0.0
        %1180 = vmatpush1.msra.mxu0 0.0
        %1181 = vmatprep.mubr.f32.mxu0 0.0
        %1182 = vmatmul.mubr.f32.gmra.mrb[0].mxu0 %v1070
        %v1183 = vpop.f32.mrb[0].mxu0
        %v1184 = vadd.f32 0.0, %v1183
        %v1185 = vpop.f32.mrb[0].mxu0
        %1186 = vmatprep.mubr.f32.mxu0 0.0
        %1187 = vmatmul.mubr.f32.gmra.mrb[0].mxu0 %v1073
        %v1188 = vpop.f32.mrb[0].mxu0
        %v1189 = vadd.f32 0.0, %v1188
        %v1190 = vpop.f32.mrb[0].mxu0
        %1191 = vmatprep.mubr.f32.mxu0 0.0
        %1192 = vmatmul.mubr.f32.gmra.mrb[0].mxu0 %v1076
        %v1193 = vpop.f32.mrb[0].mxu0
        %v1194 = vadd.f32 0.0, %v1193
        %v1195 = vpop.f32.mrb[0].mxu0
        %1196 = vmatprep.mubr.f32.mxu0 0.0
        %1197 = vmatmul.mubr.f32.gmra.mrb[0].mxu0 %v1079
        %v1198 = vpop.f32.mrb[0].mxu0
        %v1199 = vadd.f32 0.0, %v1198
        %v1200 = vpop.f32.mrb[0].mxu0
        %1201 = vmatprep.mubr.f32.mxu0 0.0
        %1202 = vmatmul.mubr.f32.gmra.mrb[0].mxu0 %v1082
        %v1203 = vpop.f32.mrb[0].mxu0
        %v1204 = vadd.f32 0.0, %v1203
        %v1205 = vpop.f32.mrb[0].mxu0
        %1206 = vmatprep.mubr.f32.mxu0 0.0
        %1207 = vmatmul.mubr.f32.gmra.mrb[0].mxu0 %v1085
        %v1208 = vpop.f32.mrb[0].mxu0
        %v1209 = vadd.f32 0.0, %v1208
        %v1210 = vpop.f32.mrb[0].mxu0
        %1211 = vmatprep.mubr.f32.mxu0 0.0
        %1212 = vmatmul.mubr.f32.gmra.mrb[0].mxu0 %v1088
        %v1213 = vpop.f32.mrb[0].mxu0
        %v1214 = vadd.f32 0.0, %v1213
        %v1215 = vpop.f32.mrb[0].mxu0
        %1216 = vmatprep.mubr.f32.mxu0 0.0
        %1217 = vmatmul.mubr.f32.gmra.mrb[0].mxu0 %v1091
        %v1218 = vpop.f32.mrb[0].mxu0
        %v1219 = vadd.f32 0.0, %v1218
        %v1220 = vpop.f32.mrb[0].mxu0
        %1221 = vmatprep.mubr.f32.mxu0 0.0
        %1222 = vmatmul.mubr.f32.gmra.mrb[0].mxu0 %v1094
        %v1223 = vpop.f32.mrb[0].mxu0
        %v1224 = vadd.f32 0.0, %v1223
        %v1225 = vpop.f32.mrb[0].mxu0
        %1226 = vmatprep.mubr.f32.mxu0 0.0
        %1227 = vmatmul.mubr.f32.gmra.mrb[0].mxu0 %v1097
        %v1228 = vpop.f32.mrb[0].mxu0
        %v1229 = vadd.f32 0.0, %v1228
        %v1230 = vpop.f32.mrb[0].mxu0
        %1231 = vmatprep.mubr.f32.mxu0 0.0
        %1232 = vmatmul.mubr.f32.gmra.mrb[0].mxu0 %v1100
        %v1233 = vpop.f32.mrb[0].mxu0
        %v1234 = vadd.f32 0.0, %v1233
        %v1235 = vpop.f32.mrb[0].mxu0
        %1236 = vmatprep.mubr.f32.mxu0 0.0
        %1237 = vmatmul.mubr.f32.gmra.mrb[0].mxu0 %v1103
        %v1238 = vpop.f32.mrb[0].mxu0
        %v1239 = vadd.f32 0.0, %v1238
        %v1240 = vpop.f32.mrb[0].mxu0
        %1241 = vmatprep.mubr.f32.mxu0 0.0
        %1242 = vmatmul.mubr.f32.gmra.mrb[0].mxu0 %v1106
        %v1243 = vpop.f32.mrb[0].mxu0
        %v1244 = vadd.f32 0.0, %v1243
        %v1245 = vpop.f32.mrb[0].mxu0
        %1246 = vmatprep.mubr.f32.mxu0 0.0
        %1247 = vmatmul.mubr.f32.gmra.mrb[0].mxu0 %v1109
        %v1248 = vpop.f32.mrb[0].mxu0
        %v1249 = vadd.f32 0.0, %v1248
        %v1250 = vpop.f32.mrb[0].mxu0
        %1251 = vmatprep.mubr.f32.mxu0 0.0
        %1252 = vmatmul.mubr.f32.gmra.mrb[0].mxu0 %v1112
        %v1253 = vpop.f32.mrb[0].mxu0
        %v1254 = vadd.f32 0.0, %v1253
        %v1255 = vpop.f32.mrb[0].mxu0
        %1256 = vmatprep.mubr.f32.mxu0 0.0
        %1257 = vmatmul.mubr.f32.gmra.mrb[0].mxu0 %v1115
        %v1258 = vpop.f32.mrb[0].mxu0
        %v1259 = vadd.f32 0.0, %v1258
        %v1260 = vpop.f32.mrb[0].mxu0
        %1261 = vdwg.mxu0
        %v1262 = vmax.f32 %v1184, 1e-24
        %v1263 = vmax.f32 %v1189, 1e-24
        %v1264 = vmax.f32 %v1194, 1e-24
        %v1265 = vmax.f32 %v1199, 1e-24
        %v1266 = vmax.f32 %v1204, 1e-24
        %v1267 = vmax.f32 %v1209, 1e-24
        %v1268 = vmax.f32 %v1214, 1e-24
        %v1269 = vmax.f32 %v1219, 1e-24
        %v1270 = vmax.f32 %v1224, 1e-24
        %v1271 = vmax.f32 %v1229, 1e-24
        %v1272 = vmax.f32 %v1234, 1e-24
        %v1273 = vmax.f32 %v1239, 1e-24
        %v1274 = vmax.f32 %v1244, 1e-24
        %v1275 = vmax.f32 %v1249, 1e-24
        %v1276 = vmax.f32 %v1254, 1e-24
        %v1277 = vmax.f32 %v1259, 1e-24
        %v1278 = vrsqrt.pop %v1262
        %v1279 = vrsqrt.pop %v1263
        %v1280 = vrsqrt.pop %v1264
        %v1281 = vrsqrt.pop %v1265
        %v1282 = vrsqrt.pop %v1266
        %v1283 = vrsqrt.pop %v1267
        %v1284 = vrsqrt.pop %v1268
        %v1285 = vrsqrt.pop %v1269
        %v1286 = vrsqrt.pop %v1270
        %v1287 = vrsqrt.pop %v1271
        %v1288 = vrsqrt.pop %v1272
        %v1289 = vrsqrt.pop %v1273
        %v1290 = vrsqrt.pop %v1274
        %v1291 = vrsqrt.pop %v1275
        %v1292 = vrsqrt.pop %v1276
        %v1293 = vrsqrt.pop %v1277
        %v1294 = vmul.f32 %v587, %v1278
        %v1295 = vmul.f32 %v592, %v1279
        %v1296 = vmul.f32 %v597, %v1280
        %v1297 = vmul.f32 %v602, %v1281
        %v1298 = vmul.f32 %v607, %v1282
        %v1299 = vmul.f32 %v612, %v1283
        %v1300 = vmul.f32 %v617, %v1284
        %v1301 = vmul.f32 %v622, %v1285
        %v1302 = vmul.f32 %v627, %v1286
        %v1303 = vmul.f32 %v632, %v1287
        %v1304 = vmul.f32 %v637, %v1288
        %v1305 = vmul.f32 %v642, %v1289
        %v1306 = vmul.f32 %v647, %v1290
        %v1307 = vmul.f32 %v652, %v1291
        %v1308 = vmul.f32 %v657, %v1292
        %v1309 = vmul.f32 %v662, %v1293
        %v1310 = vld [vmem:[%s6] sm:$0x1]
        %v1312 = vlaneseq
        %v1313 = vshrl.u32 %v1312, 7
        %v1314 = vsub.s32 0, %v1313
        %v1315 = vrot.slane %v1310, %v1314
        %v1317 = vmul.f32 %v1294, %v1315
        %v1318 = vmul.f32 %v1295, %v1315
        %v1319 = vmul.f32 %v1296, %v1315
        %v1320 = vmul.f32 %v1297, %v1315
        %v1321 = vmul.f32 %v1298, %v1315
        %v1322 = vmul.f32 %v1299, %v1315
        %v1323 = vmul.f32 %v1300, %v1315
        %v1324 = vmul.f32 %v1301, %v1315
        %v1325 = vmul.f32 %v1302, %v1315
        %v1326 = vmul.f32 %v1303, %v1315
        %v1327 = vmul.f32 %v1304, %v1315
        %v1328 = vmul.f32 %v1305, %v1315
        %v1329 = vmul.f32 %v1306, %v1315
        %v1330 = vmul.f32 %v1307, %v1315
        %v1331 = vmul.f32 %v1308, %v1315
        %v1332 = vmul.f32 %v1309, %v1315
        %v1333 = vmul.f32 %v737, %v737
        %v1334 = vmul.f32 %v742, %v742
        %v1335 = vmul.f32 %v747, %v747
        %v1336 = vmul.f32 %v752, %v752
        %v1337 = vmul.f32 %v757, %v757
        %v1338 = vmul.f32 %v762, %v762
        %v1339 = vmul.f32 %v767, %v767
        %v1340 = vmul.f32 %v772, %v772
        %v1341 = vmul.f32 %v777, %v777
        %v1342 = vmul.f32 %v782, %v782
        %v1343 = vmul.f32 %v787, %v787
        %v1344 = vmul.f32 %v792, %v792
        %v1345 = vmul.f32 %v797, %v797
        %v1346 = vmul.f32 %v802, %v802
        %v1347 = vmul.f32 %v807, %v807
        %v1348 = vmul.f32 %v812, %v812
        %v1350 = vsel %vm471, %v1333, 0
        %v1353 = vsel %vm471, %v1334, 0
        %v1356 = vsel %vm471, %v1335, 0
        %v1359 = vsel %vm471, %v1336, 0
        %v1362 = vsel %vm471, %v1337, 0
        %v1365 = vsel %vm471, %v1338, 0
        %v1368 = vsel %vm471, %v1339, 0
        %v1371 = vsel %vm471, %v1340, 0
        %v1374 = vsel %vm471, %v1341, 0
        %v1377 = vsel %vm471, %v1342, 0
        %v1380 = vsel %vm471, %v1343, 0
        %v1383 = vsel %vm471, %v1344, 0
        %v1386 = vsel %vm471, %v1345, 0
        %v1389 = vsel %vm471, %v1346, 0
        %v1392 = vsel %vm471, %v1347, 0
        %v1395 = vsel %vm471, %v1348, 0
        %1397 = vmatprep.subr.mxu0 0.0
        %1398 = vmatpush1.msra.mxu0 %v1049
        %1399 = vmatprep.subr.mxu0 0.0
        %1400 = vmatpush1.msra.mxu0 %v1050
        %1401 = vmatprep.subr.mxu0 0.0
        %1402 = vmatpush1.msra.mxu0 %v1051
        %1403 = vmatprep.subr.mxu0 0.0
        %1404 = vmatpush1.msra.mxu0 %v1052
        %1405 = vmatprep.subr.mxu0 0.0
        %1406 = vmatpush1.msra.mxu0 0.0
        %1407 = vmatprep.subr.mxu0 0.0
        %1408 = vmatpush1.msra.mxu0 0.0
        %1409 = vmatprep.subr.mxu0 0.0
        %1410 = vmatpush1.msra.mxu0 0.0
        %1411 = vmatprep.subr.mxu0 0.0
        %1412 = vmatpush1.msra.mxu0 0.0
        %1413 = vmatprep.subr.mxu0 0.0
        %1414 = vmatpush1.msra.mxu0 0.0
        %1415 = vmatprep.subr.mxu0 0.0
        %1416 = vmatpush1.msra.mxu0 0.0
        %1417 = vmatprep.subr.mxu0 0.0
        %1418 = vmatpush1.msra.mxu0 0.0
        %1419 = vmatprep.subr.mxu0 0.0
        %1420 = vmatpush1.msra.mxu0 0.0
        %1421 = vmatprep.subr.mxu0 0.0
        %1422 = vmatpush1.msra.mxu0 0.0
        %1423 = vmatprep.subr.mxu0 0.0
        %1424 = vmatpush1.msra.mxu0 0.0
        %1425 = vmatprep.subr.mxu0 0.0
        %1426 = vmatpush1.msra.mxu0 0.0
        %1427 = vmatprep.subr.mxu0 0.0
        %1428 = vmatpush1.msra.mxu0 0.0
        %1429 = vmatprep.subr.mxu0 0.0
        %1430 = vmatpush1.msra.mxu0 0.0
        %1431 = vmatprep.subr.mxu0 0.0
        %1432 = vmatpush1.msra.mxu0 0.0
        %1433 = vmatprep.subr.mxu0 0.0
        %1434 = vmatpush1.msra.mxu0 0.0
        %1435 = vmatprep.subr.mxu0 0.0
        %1436 = vmatpush1.msra.mxu0 0.0
        %1437 = vmatprep.subr.mxu0 0.0
        %1438 = vmatpush1.msra.mxu0 0.0
        %1439 = vmatprep.subr.mxu0 0.0
        %1440 = vmatpush1.msra.mxu0 0.0
        %1441 = vmatprep.subr.mxu0 0.0
        %1442 = vmatpush1.msra.mxu0 0.0
        %1443 = vmatprep.subr.mxu0 0.0
        %1444 = vmatpush1.msra.mxu0 0.0
        %1445 = vmatprep.subr.mxu0 0.0
        %1446 = vmatpush1.msra.mxu0 0.0
        %1447 = vmatprep.subr.mxu0 0.0
        %1448 = vmatpush1.msra.mxu0 0.0
        %1449 = vmatprep.subr.mxu0 0.0
        %1450 = vmatpush1.msra.mxu0 0.0
        %1451 = vmatprep.subr.mxu0 0.0
        %1452 = vmatpush1.msra.mxu0 0.0
        %1453 = vmatprep.subr.mxu0 0.0
        %1454 = vmatpush1.msra.mxu0 0.0
        %1455 = vmatprep.subr.mxu0 0.0
        %1456 = vmatpush1.msra.mxu0 0.0
        %1457 = vmatprep.subr.mxu0 0.0
        %1458 = vmatpush1.msra.mxu0 0.0
        %1459 = vmatprep.subr.mxu0 0.0
        %1460 = vmatpush1.msra.mxu0 0.0
        %1461 = vmatprep.mubr.f32.mxu0 0.0
        %1462 = vmatmul.mubr.f32.gmra.mrb[0].mxu0 %v1350
        %v1463 = vpop.f32.mrb[0].mxu0
        %v1464 = vadd.f32 0.0, %v1463
        %v1465 = vpop.f32.mrb[0].mxu0
        %1466 = vmatprep.mubr.f32.mxu0 0.0
        %1467 = vmatmul.mubr.f32.gmra.mrb[0].mxu0 %v1353
        %v1468 = vpop.f32.mrb[0].mxu0
        %v1469 = vadd.f32 0.0, %v1468
        %v1470 = vpop.f32.mrb[0].mxu0
        %1471 = vmatprep.mubr.f32.mxu0 0.0
        %1472 = vmatmul.mubr.f32.gmra.mrb[0].mxu0 %v1356
        %v1473 = vpop.f32.mrb[0].mxu0
        %v1474 = vadd.f32 0.0, %v1473
        %v1475 = vpop.f32.mrb[0].mxu0
        %1476 = vmatprep.mubr.f32.mxu0 0.0
        %1477 = vmatmul.mubr.f32.gmra.mrb[0].mxu0 %v1359
        %v1478 = vpop.f32.mrb[0].mxu0
        %v1479 = vadd.f32 0.0, %v1478
        %v1480 = vpop.f32.mrb[0].mxu0
        %1481 = vmatprep.mubr.f32.mxu0 0.0
        %1482 = vmatmul.mubr.f32.gmra.mrb[0].mxu0 %v1362
        %v1483 = vpop.f32.mrb[0].mxu0
        %v1484 = vadd.f32 0.0, %v1483
        %v1485 = vpop.f32.mrb[0].mxu0
        %1486 = vmatprep.mubr.f32.mxu0 0.0
        %1487 = vmatmul.mubr.f32.gmra.mrb[0].mxu0 %v1365
        %v1488 = vpop.f32.mrb[0].mxu0
        %v1489 = vadd.f32 0.0, %v1488
        %v1490 = vpop.f32.mrb[0].mxu0
        %1491 = vmatprep.mubr.f32.mxu0 0.0
        %1492 = vmatmul.mubr.f32.gmra.mrb[0].mxu0 %v1368
        %v1493 = vpop.f32.mrb[0].mxu0
        %v1494 = vadd.f32 0.0, %v1493
        %v1495 = vpop.f32.mrb[0].mxu0
        %1496 = vmatprep.mubr.f32.mxu0 0.0
        %1497 = vmatmul.mubr.f32.gmra.mrb[0].mxu0 %v1371
        %v1498 = vpop.f32.mrb[0].mxu0
        %v1499 = vadd.f32 0.0, %v1498
        %v1500 = vpop.f32.mrb[0].mxu0
        %1501 = vmatprep.mubr.f32.mxu0 0.0
        %1502 = vmatmul.mubr.f32.gmra.mrb[0].mxu0 %v1374
        %v1503 = vpop.f32.mrb[0].mxu0
        %v1504 = vadd.f32 0.0, %v1503
        %v1505 = vpop.f32.mrb[0].mxu0
        %1506 = vmatprep.mubr.f32.mxu0 0.0
        %1507 = vmatmul.mubr.f32.gmra.mrb[0].mxu0 %v1377
        %v1508 = vpop.f32.mrb[0].mxu0
        %v1509 = vadd.f32 0.0, %v1508
        %v1510 = vpop.f32.mrb[0].mxu0
        %1511 = vmatprep.mubr.f32.mxu0 0.0
        %1512 = vmatmul.mubr.f32.gmra.mrb[0].mxu0 %v1380
        %v1513 = vpop.f32.mrb[0].mxu0
        %v1514 = vadd.f32 0.0, %v1513
        %v1515 = vpop.f32.mrb[0].mxu0
        %1516 = vmatprep.mubr.f32.mxu0 0.0
        %1517 = vmatmul.mubr.f32.gmra.mrb[0].mxu0 %v1383
        %v1518 = vpop.f32.mrb[0].mxu0
        %v1519 = vadd.f32 0.0, %v1518
        %v1520 = vpop.f32.mrb[0].mxu0
        %1521 = vmatprep.mubr.f32.mxu0 0.0
        %1522 = vmatmul.mubr.f32.gmra.mrb[0].mxu0 %v1386
        %v1523 = vpop.f32.mrb[0].mxu0
        %v1524 = vadd.f32 0.0, %v1523
        %v1525 = vpop.f32.mrb[0].mxu0
        %1526 = vmatprep.mubr.f32.mxu0 0.0
        %1527 = vmatmul.mubr.f32.gmra.mrb[0].mxu0 %v1389
        %v1528 = vpop.f32.mrb[0].mxu0
        %v1529 = vadd.f32 0.0, %v1528
        %v1530 = vpop.f32.mrb[0].mxu0
        %1531 = vmatprep.mubr.f32.mxu0 0.0
        %1532 = vmatmul.mubr.f32.gmra.mrb[0].mxu0 %v1392
        %v1533 = vpop.f32.mrb[0].mxu0
        %v1534 = vadd.f32 0.0, %v1533
        %v1535 = vpop.f32.mrb[0].mxu0
        %1536 = vmatprep.mubr.f32.mxu0 0.0
        %1537 = vmatmul.mubr.f32.gmra.mrb[0].mxu0 %v1395
        %v1538 = vpop.f32.mrb[0].mxu0
        %v1539 = vadd.f32 0.0, %v1538
        %v1540 = vpop.f32.mrb[0].mxu0
        %1541 = vdwg.mxu0
        %v1542 = vmax.f32 %v1464, 1e-24
        %v1543 = vmax.f32 %v1469, 1e-24
        %v1544 = vmax.f32 %v1474, 1e-24
        %v1545 = vmax.f32 %v1479, 1e-24
        %v1546 = vmax.f32 %v1484, 1e-24
        %v1547 = vmax.f32 %v1489, 1e-24
        %v1548 = vmax.f32 %v1494, 1e-24
        %v1549 = vmax.f32 %v1499, 1e-24
        %v1550 = vmax.f32 %v1504, 1e-24
        %v1551 = vmax.f32 %v1509, 1e-24
        %v1552 = vmax.f32 %v1514, 1e-24
        %v1553 = vmax.f32 %v1519, 1e-24
        %v1554 = vmax.f32 %v1524, 1e-24
        %v1555 = vmax.f32 %v1529, 1e-24
        %v1556 = vmax.f32 %v1534, 1e-24
        %v1557 = vmax.f32 %v1539, 1e-24
        %v1558 = vrsqrt.pop %v1542
        %v1559 = vrsqrt.pop %v1543
        %v1560 = vrsqrt.pop %v1544
        %v1561 = vrsqrt.pop %v1545
        %v1562 = vrsqrt.pop %v1546
        %v1563 = vrsqrt.pop %v1547
        %v1564 = vrsqrt.pop %v1548
        %v1565 = vrsqrt.pop %v1549
        %v1566 = vrsqrt.pop %v1550
        %v1567 = vrsqrt.pop %v1551
        %v1568 = vrsqrt.pop %v1552
        %v1569 = vrsqrt.pop %v1553
        %v1570 = vrsqrt.pop %v1554
        %v1571 = vrsqrt.pop %v1555
        %v1572 = vrsqrt.pop %v1556
        %v1573 = vrsqrt.pop %v1557
        %v1574 = vmul.f32 %v737, %v1558
        %v1575 = vmul.f32 %v742, %v1559
        %v1576 = vmul.f32 %v747, %v1560
        %v1577 = vmul.f32 %v752, %v1561
        %v1578 = vmul.f32 %v757, %v1562
        %v1579 = vmul.f32 %v762, %v1563
        %v1580 = vmul.f32 %v767, %v1564
        %v1581 = vmul.f32 %v772, %v1565
        %v1582 = vmul.f32 %v777, %v1566
        %v1583 = vmul.f32 %v782, %v1567
        %v1584 = vmul.f32 %v787, %v1568
        %v1585 = vmul.f32 %v792, %v1569
        %v1586 = vmul.f32 %v797, %v1570
        %v1587 = vmul.f32 %v802, %v1571
        %v1588 = vmul.f32 %v807, %v1572
        %v1589 = vmul.f32 %v812, %v1573
        %v1590 = vld [vmem:[%s8] sm:$0xff]
        %v1591 = vld [vmem:[%s8 + $0x8] sm:$0xff]
        %v1592 = vld [vmem:[%s8 + $0x10] sm:$0xff]
        %v1593 = vld [vmem:[%s8 + $0x18] sm:$0xff]
        %v1594 = vld [vmem:[%s8 + $0x20] sm:$0xff]
        %v1595 = vld [vmem:[%s8 + $0x28] sm:$0xff]
        %v1596 = vld [vmem:[%s8 + $0x30] sm:$0xff]
        %v1597 = vld [vmem:[%s8 + $0x38] sm:$0xff]
        %v1598 = vld [vmem:[%s8 + $0x40] sm:$0xff]
        %v1599 = vld [vmem:[%s8 + $0x48] sm:$0xff]
        %v1600 = vld [vmem:[%s8 + $0x50] sm:$0xff]
        %v1601 = vld [vmem:[%s8 + $0x58] sm:$0xff]
        %v1602 = vld [vmem:[%s8 + $0x60] sm:$0xff]
        %v1603 = vld [vmem:[%s8 + $0x68] sm:$0xff]
        %v1604 = vld [vmem:[%s8 + $0x70] sm:$0xff]
        %v1605 = vld [vmem:[%s8 + $0x78] sm:$0xff]
        %v1606 = vld [vmem:[%s8 + $0x80] sm:$0xff]
        %v1607 = vld [vmem:[%s8 + $0x88] sm:$0xff]
        %v1608 = vld [vmem:[%s8 + $0x90] sm:$0xff]
        %v1609 = vld [vmem:[%s8 + $0x98] sm:$0xff]
        %v1610 = vld [vmem:[%s8 + $0xa0] sm:$0xff]
        %v1611 = vld [vmem:[%s8 + $0xa8] sm:$0xff]
        %v1612 = vld [vmem:[%s8 + $0xb0] sm:$0xff]
        %v1613 = vld [vmem:[%s8 + $0xb8] sm:$0xff]
        %v1614 = vld [vmem:[%s8 + $0xc0] sm:$0xff]
        %v1615 = vld [vmem:[%s8 + $0xc8] sm:$0xff]
        %v1616 = vld [vmem:[%s8 + $0xd0] sm:$0xff]
        %v1617 = vld [vmem:[%s8 + $0xd8] sm:$0xff]
        %v1618 = vld [vmem:[%s8 + $0xe0] sm:$0xff]
        %v1619 = vld [vmem:[%s8 + $0xe8] sm:$0xff]
        %v1620 = vld [vmem:[%s8 + $0xf0] sm:$0xff]
        %v1621 = vld [vmem:[%s8 + $0xf8] sm:$0xff]
        %v1622 = vpack.c.bf16 %v1591, %v1590
        %v1623 = vpack.c.bf16 %v1593, %v1592
        %v1624 = vpack.c.bf16 %v1595, %v1594
        %v1625 = vpack.c.bf16 %v1597, %v1596
        %v1626 = vpack.c.bf16 %v1599, %v1598
        %v1627 = vpack.c.bf16 %v1601, %v1600
        %v1628 = vpack.c.bf16 %v1603, %v1602
        %v1629 = vpack.c.bf16 %v1605, %v1604
        %v1630 = vpack.c.bf16 %v1607, %v1606
        %v1631 = vpack.c.bf16 %v1609, %v1608
        %v1632 = vpack.c.bf16 %v1611, %v1610
        %v1633 = vpack.c.bf16 %v1613, %v1612
        %v1634 = vpack.c.bf16 %v1615, %v1614
        %v1635 = vpack.c.bf16 %v1617, %v1616
        %v1636 = vpack.c.bf16 %v1619, %v1618
        %v1637 = vpack.c.bf16 %v1621, %v1620
        %v1638 = vpack.c.bf16 %v1318, %v1317
        %v1639 = vpack.c.bf16 %v1320, %v1319
        %v1640 = vpack.c.bf16 %v1322, %v1321
        %v1641 = vpack.c.bf16 %v1324, %v1323
        %v1642 = vmul.f32 %v1574, %v1590
        %v1643 = vmul.f32 %v1575, %v1591
        %v1644 = vmul.f32 %v1576, %v1592
        %v1645 = vmul.f32 %v1577, %v1593
        %v1646 = vmul.f32 %v1578, %v1594
        %v1647 = vmul.f32 %v1579, %v1595
        %v1648 = vmul.f32 %v1580, %v1596
        %v1649 = vmul.f32 %v1581, %v1597
        %v1650 = vmul.f32 %v1574, %v1598
        %v1651 = vmul.f32 %v1575, %v1599
        %v1652 = vmul.f32 %v1576, %v1600
        %v1653 = vmul.f32 %v1577, %v1601
        %v1654 = vmul.f32 %v1578, %v1602
        %v1655 = vmul.f32 %v1579, %v1603
        %v1656 = vmul.f32 %v1580, %v1604
        %v1657 = vmul.f32 %v1581, %v1605
        %v1658 = vmul.f32 %v1574, %v1606
        %v1659 = vmul.f32 %v1575, %v1607
        %v1660 = vmul.f32 %v1576, %v1608
        %v1661 = vmul.f32 %v1577, %v1609
        %v1662 = vmul.f32 %v1578, %v1610
        %v1663 = vmul.f32 %v1579, %v1611
        %v1664 = vmul.f32 %v1580, %v1612
        %v1665 = vmul.f32 %v1581, %v1613
        %v1666 = vmul.f32 %v1574, %v1614
        %v1667 = vmul.f32 %v1575, %v1615
        %v1668 = vmul.f32 %v1576, %v1616
        %v1669 = vmul.f32 %v1577, %v1617
        %v1670 = vmul.f32 %v1578, %v1618
        %v1671 = vmul.f32 %v1579, %v1619
        %v1672 = vmul.f32 %v1580, %v1620
        %v1673 = vmul.f32 %v1581, %v1621
        %v1674 = vpack.c.bf16 %v1643, %v1642
        %v1675 = vpack.c.bf16 %v1645, %v1644
        %v1676 = vpack.c.bf16 %v1647, %v1646
        %v1677 = vpack.c.bf16 %v1649, %v1648
        %v1678 = vpack.c.bf16 %v1651, %v1650
        %v1679 = vpack.c.bf16 %v1653, %v1652
        %v1680 = vpack.c.bf16 %v1655, %v1654
        %v1681 = vpack.c.bf16 %v1657, %v1656
        %v1682 = vpack.c.bf16 %v1659, %v1658
        %v1683 = vpack.c.bf16 %v1661, %v1660
        %v1684 = vpack.c.bf16 %v1663, %v1662
        %v1685 = vpack.c.bf16 %v1665, %v1664
        %v1686 = vpack.c.bf16 %v1667, %v1666
        %v1687 = vpack.c.bf16 %v1669, %v1668
        %v1688 = vpack.c.bf16 %v1671, %v1670
        %v1689 = vpack.c.bf16 %v1673, %v1672
        %v1690 = vmul.f32 %v1033, %v1590
        %v1691 = vmul.f32 %v1034, %v1591
        %v1692 = vmul.f32 %v1035, %v1592
        %v1693 = vmul.f32 %v1036, %v1593
        %v1694 = vmul.f32 %v1037, %v1594
        %v1695 = vmul.f32 %v1038, %v1595
        %v1696 = vmul.f32 %v1039, %v1596
        %v1697 = vmul.f32 %v1040, %v1597
        %v1698 = vmul.f32 %v1033, %v1598
        %v1699 = vmul.f32 %v1034, %v1599
        %v1700 = vmul.f32 %v1035, %v1600
        %v1701 = vmul.f32 %v1036, %v1601
        %v1702 = vmul.f32 %v1037, %v1602
        %v1703 = vmul.f32 %v1038, %v1603
        %v1704 = vmul.f32 %v1039, %v1604
        %v1705 = vmul.f32 %v1040, %v1605
        %v1706 = vmul.f32 %v1033, %v1606
        %v1707 = vmul.f32 %v1034, %v1607
        %v1708 = vmul.f32 %v1035, %v1608
        %v1709 = vmul.f32 %v1036, %v1609
        %v1710 = vmul.f32 %v1037, %v1610
        %v1711 = vmul.f32 %v1038, %v1611
        %v1712 = vmul.f32 %v1039, %v1612
        %v1713 = vmul.f32 %v1040, %v1613
        %v1714 = vmul.f32 %v1033, %v1614
        %v1715 = vmul.f32 %v1034, %v1615
        %v1716 = vmul.f32 %v1035, %v1616
        %v1717 = vmul.f32 %v1036, %v1617
        %v1718 = vmul.f32 %v1037, %v1618
        %v1719 = vmul.f32 %v1038, %v1619
        %v1720 = vmul.f32 %v1039, %v1620
        %v1721 = vmul.f32 %v1040, %v1621
        %v1722 = vpack.c.bf16 %v1691, %v1690
        %v1723 = vpack.c.bf16 %v1693, %v1692
        %v1724 = vpack.c.bf16 %v1695, %v1694
        %v1725 = vpack.c.bf16 %v1697, %v1696
        %v1726 = vpack.c.bf16 %v1699, %v1698
        %v1727 = vpack.c.bf16 %v1701, %v1700
        %v1728 = vpack.c.bf16 %v1703, %v1702
        %v1729 = vpack.c.bf16 %v1705, %v1704
        %v1730 = vpack.c.bf16 %v1707, %v1706
        %v1731 = vpack.c.bf16 %v1709, %v1708
        %v1732 = vpack.c.bf16 %v1711, %v1710
        %v1733 = vpack.c.bf16 %v1713, %v1712
        %v1734 = vpack.c.bf16 %v1715, %v1714
        %v1735 = vpack.c.bf16 %v1717, %v1716
        %v1736 = vpack.c.bf16 %v1719, %v1718
        %v1737 = vpack.c.bf16 %v1721, %v1720
        %v1738 = vld [vmem:[%s9] sm:$0xff]
        %v1739 = vld [vmem:[%s9 + $0x8] sm:$0xff]
        %v1740 = vld [vmem:[%s9 + $0x10] sm:$0xff]
        %v1741 = vld [vmem:[%s9 + $0x18] sm:$0xff]
        %v1742 = vld [vmem:[%s9 + $0x20] sm:$0xff]
        %v1743 = vld [vmem:[%s9 + $0x28] sm:$0xff]
        %v1744 = vld [vmem:[%s9 + $0x30] sm:$0xff]
        %v1745 = vld [vmem:[%s9 + $0x38] sm:$0xff]
        %v1746 = vld [vmem:[%s9 + $0x40] sm:$0xff]
        %v1747 = vld [vmem:[%s9 + $0x48] sm:$0xff]
        %v1748 = vld [vmem:[%s9 + $0x50] sm:$0xff]
        %v1749 = vld [vmem:[%s9 + $0x58] sm:$0xff]
        %v1750 = vld [vmem:[%s9 + $0x60] sm:$0xff]
        %v1751 = vld [vmem:[%s9 + $0x68] sm:$0xff]
        %v1752 = vld [vmem:[%s9 + $0x70] sm:$0xff]
        %v1753 = vld [vmem:[%s9 + $0x78] sm:$0xff]
        %v1755 = vsel %vm471, %v1638, 0
        %v1758 = vsel %vm471, %v1639, 0
        %v1761 = vsel %vm471, %v1640, 0
        %v1764 = vsel %vm471, %v1641, 0
        %v1767 = vsel %vm471, %v1674, 0
        %v1770 = vsel %vm471, %v1675, 0
        %v1773 = vsel %vm471, %v1676, 0
        %v1776 = vsel %vm471, %v1677, 0
        %v1779 = vsel %vm471, %v1678, 0
        %v1782 = vsel %vm471, %v1679, 0
        %v1785 = vsel %vm471, %v1680, 0
        %v1788 = vsel %vm471, %v1681, 0
        %v1791 = vsel %vm471, %v1682, 0
        %v1794 = vsel %vm471, %v1683, 0
        %v1797 = vsel %vm471, %v1684, 0
        %v1800 = vsel %vm471, %v1685, 0
        %v1803 = vsel %vm471, %v1686, 0
        %v1806 = vsel %vm471, %v1687, 0
        %v1809 = vsel %vm471, %v1688, 0
        %v1812 = vsel %vm471, %v1689, 0
        %1814 = vmatprep.subr.bf16.mxu0 0
        %1815 = vmatpush1.bf16.xpose.msra.mxu0 %v1767
        %1816 = vmatprep.subr.bf16.mxu0 0
        %1817 = vmatpush1.bf16.xpose.msra.mxu0 %v1770
        %1818 = vmatprep.subr.bf16.mxu0 0
        %1819 = vmatpush1.bf16.xpose.msra.mxu0 %v1773
        %1820 = vmatprep.subr.bf16.mxu0 0
        %1821 = vmatpush1.bf16.xpose.msra.mxu0 %v1776
        %1822 = vmatprep.subr.bf16.mxu0 0
        %1823 = vmatpush1.bf16.xpose.msra.mxu0 %v1779
        %1824 = vmatprep.subr.bf16.mxu0 0
        %1825 = vmatpush1.bf16.xpose.msra.mxu0 %v1782
        %1826 = vmatprep.subr.bf16.mxu0 0
        %1827 = vmatpush1.bf16.xpose.msra.mxu0 %v1785
        %1828 = vmatprep.subr.bf16.mxu0 0
        %1829 = vmatpush1.bf16.xpose.msra.mxu0 %v1788
        %1830 = vmatprep.subr.bf16.mxu0 0
        %1831 = vmatpush1.bf16.xpose.msra.mxu0 %v1791
        %1832 = vmatprep.subr.bf16.mxu0 0
        %1833 = vmatpush1.bf16.xpose.msra.mxu0 %v1794
        %1834 = vmatprep.subr.bf16.mxu0 0
        %1835 = vmatpush1.bf16.xpose.msra.mxu0 %v1797
        %1836 = vmatprep.subr.bf16.mxu0 0
        %1837 = vmatpush1.bf16.xpose.msra.mxu0 %v1800
        %1838 = vmatprep.subr.bf16.mxu0 0
        %1839 = vmatpush1.bf16.xpose.msra.mxu0 %v1803
        %1840 = vmatprep.subr.bf16.mxu0 0
        %1841 = vmatpush1.bf16.xpose.msra.mxu0 %v1806
        %1842 = vmatprep.subr.bf16.mxu0 0
        %1843 = vmatpush1.bf16.xpose.msra.mxu0 %v1809
        %1844 = vmatprep.subr.bf16.mxu0 0
        %1845 = vmatpush1.bf16.xpose.msra.mxu0 %v1812
        %1846 = vmatprep.mubr.bf16.mxu0 0
        %1847 = vmatmul.mubr.bf16.gmra.mrb[0].mxu0 %v1755
        %v1848 = vpop.f32.mrb[0].mxu0
        %v1849 = vadd.f32 %v1738, %v1848
        %v1850 = vpop.f32.mrb[0].mxu0
        %v1851 = vadd.f32 %v1739, %v1850
        %v1852 = vpop.f32.mrb[0].mxu0
        %v1853 = vadd.f32 %v1740, %v1852
        %v1854 = vpop.f32.mrb[0].mxu0
        %v1855 = vadd.f32 %v1741, %v1854
        %1856 = vmatprep.mubr.bf16.mxu0 0
        %1857 = vmatmul.mubr.bf16.gmra.mrb[0].mxu0 %v1758
        %v1858 = vpop.f32.mrb[0].mxu0
        %v1859 = vadd.f32 %v1742, %v1858
        %v1860 = vpop.f32.mrb[0].mxu0
        %v1861 = vadd.f32 %v1743, %v1860
        %v1862 = vpop.f32.mrb[0].mxu0
        %v1863 = vadd.f32 %v1744, %v1862
        %v1864 = vpop.f32.mrb[0].mxu0
        %v1865 = vadd.f32 %v1745, %v1864
        %1866 = vmatprep.mubr.bf16.mxu0 0
        %1867 = vmatmul.mubr.bf16.gmra.mrb[0].mxu0 %v1761
        %v1868 = vpop.f32.mrb[0].mxu0
        %v1869 = vadd.f32 %v1746, %v1868
        %v1870 = vpop.f32.mrb[0].mxu0
        %v1871 = vadd.f32 %v1747, %v1870
        %v1872 = vpop.f32.mrb[0].mxu0
        %v1873 = vadd.f32 %v1748, %v1872
        %v1874 = vpop.f32.mrb[0].mxu0
        %v1875 = vadd.f32 %v1749, %v1874
        %1876 = vmatprep.mubr.bf16.mxu0 0
        %1877 = vmatmul.mubr.bf16.gmra.mrb[0].mxu0 %v1764
        %v1878 = vpop.f32.mrb[0].mxu0
        %v1879 = vadd.f32 %v1750, %v1878
        %v1880 = vpop.f32.mrb[0].mxu0
        %v1881 = vadd.f32 %v1751, %v1880
        %v1882 = vpop.f32.mrb[0].mxu0
        %v1883 = vadd.f32 %v1752, %v1882
        %v1884 = vpop.f32.mrb[0].mxu0
        %v1885 = vadd.f32 %v1753, %v1884
        %1886 = vdwg.mxu0
        %v1887 = vmul.f32 %v1849, 1.442695
        %v1888 = vpow.pop %v1887
        %v1889 = vmul.f32 %v1851, 1.442695
        %v1890 = vpow.pop %v1889
        %v1891 = vmul.f32 %v1853, 1.442695
        %v1892 = vpow.pop %v1891
        %v1893 = vmul.f32 %v1855, 1.442695
        %v1894 = vpow.pop %v1893
        %v1895 = vmul.f32 %v1859, 1.442695
        %v1896 = vpow.pop %v1895
        %v1897 = vmul.f32 %v1861, 1.442695
        %v1898 = vpow.pop %v1897
        %v1899 = vmul.f32 %v1863, 1.442695
        %v1900 = vpow.pop %v1899
        %v1901 = vmul.f32 %v1865, 1.442695
        %v1902 = vpow.pop %v1901
        %v1903 = vmul.f32 %v1869, 1.442695
        %v1904 = vpow.pop %v1903
        %v1905 = vmul.f32 %v1871, 1.442695
        %v1906 = vpow.pop %v1905
        %v1907 = vmul.f32 %v1873, 1.442695
        %v1908 = vpow.pop %v1907
        %v1909 = vmul.f32 %v1875, 1.442695
        %v1910 = vpow.pop %v1909
        %v1911 = vmul.f32 %v1879, 1.442695
        %v1912 = vpow.pop %v1911
        %v1913 = vmul.f32 %v1881, 1.442695
        %v1914 = vpow.pop %v1913
        %v1915 = vmul.f32 %v1883, 1.442695
        %v1916 = vpow.pop %v1915
        %v1917 = vmul.f32 %v1885, 1.442695
        %v1918 = vpow.pop %v1917
        %v1919 = vpack.c.bf16 %v1892, %v1888
        %v1920 = vpack.c.bf16 %v1894, %v1890
        %v1921 = vpack.c.bf16 %v1900, %v1896
        %v1922 = vpack.c.bf16 %v1902, %v1898
        %v1923 = vpack.c.bf16 %v1908, %v1904
        %v1924 = vpack.c.bf16 %v1910, %v1906
        %v1925 = vpack.c.bf16 %v1916, %v1912
        %v1926 = vpack.c.bf16 %v1918, %v1914
        %1927 = vmatprep.subr.bf16.mxu0 0
        %1928 = vmatpush1.bf16.msra.mxu0 %v1722
        %1929 = vmatprep.subr.bf16.mxu0 0
        %1930 = vmatpush1.bf16.msra.mxu0 %v1723
        %1931 = vmatprep.subr.bf16.mxu0 0
        %1932 = vmatpush1.bf16.msra.mxu0 %v1724
        %1933 = vmatprep.subr.bf16.mxu0 0
        %1934 = vmatpush1.bf16.msra.mxu0 %v1725
        %1935 = vmatprep.subr.bf16.mxu0 0
        %1936 = vmatpush1.bf16.msra.mxu0 %v1726
        %1937 = vmatprep.subr.bf16.mxu0 0
        %1938 = vmatpush1.bf16.msra.mxu0 %v1727
        %1939 = vmatprep.subr.bf16.mxu0 0
        %1940 = vmatpush1.bf16.msra.mxu0 %v1728
        %1941 = vmatprep.subr.bf16.mxu0 0
        %1942 = vmatpush1.bf16.msra.mxu0 %v1729
        %1943 = vmatprep.subr.bf16.mxu0 0
        %1944 = vmatpush1.bf16.msra.mxu0 %v1730
        %1945 = vmatprep.subr.bf16.mxu0 0
        %1946 = vmatpush1.bf16.msra.mxu0 %v1731
        %1947 = vmatprep.subr.bf16.mxu0 0
        %1948 = vmatpush1.bf16.msra.mxu0 %v1732
        %1949 = vmatprep.subr.bf16.mxu0 0
        %1950 = vmatpush1.bf16.msra.mxu0 %v1733
        %1951 = vmatprep.subr.bf16.mxu0 0
        %1952 = vmatpush1.bf16.msra.mxu0 %v1734
        %1953 = vmatprep.subr.bf16.mxu0 0
        %1954 = vmatpush1.bf16.msra.mxu0 %v1735
        %1955 = vmatprep.subr.bf16.mxu0 0
        %1956 = vmatpush1.bf16.msra.mxu0 %v1736
        %1957 = vmatprep.subr.bf16.mxu0 0
        %1958 = vmatpush1.bf16.msra.mxu0 %v1737
        %1959 = vmatprep.mubr.bf16.mxu0 %v1920
        %1960 = vmatmul.mubr.bf16.gmra.mrb[0].mxu0 %v1919
        %v1961 = vpop.f32.mrb[0].mxu0
        %v1962 = vadd.f32 0.0, %v1961
        %v1963 = vpop.f32.mrb[0].mxu0
        %v1964 = vpop.f32.mrb[0].mxu0
        %v1965 = vadd.f32 0.0, %v1964
        %v1966 = vpop.f32.mrb[0].mxu0
        %1967 = vmatprep.mubr.bf16.mxu0 %v1922
        %1968 = vmatmul.mubr.bf16.gmra.mrb[0].mxu0 %v1921
        %v1969 = vpop.f32.mrb[0].mxu0
        %v1970 = vadd.f32 0.0, %v1969
        %v1971 = vpop.f32.mrb[0].mxu0
        %v1972 = vpop.f32.mrb[0].mxu0
        %v1973 = vadd.f32 0.0, %v1972
        %v1974 = vpop.f32.mrb[0].mxu0
        %1975 = vmatprep.mubr.bf16.mxu0 %v1924
        %1976 = vmatmul.mubr.bf16.gmra.mrb[0].mxu0 %v1923
        %v1977 = vpop.f32.mrb[0].mxu0
        %v1978 = vadd.f32 0.0, %v1977
        %v1979 = vpop.f32.mrb[0].mxu0
        %v1980 = vpop.f32.mrb[0].mxu0
        %v1981 = vadd.f32 0.0, %v1980
        %v1982 = vpop.f32.mrb[0].mxu0
        %1983 = vmatprep.mubr.bf16.mxu0 %v1926
        %1984 = vmatmul.mubr.bf16.gmra.mrb[0].mxu0 %v1925
        %v1985 = vpop.f32.mrb[0].mxu0
        %v1986 = vadd.f32 0.0, %v1985
        %v1987 = vpop.f32.mrb[0].mxu0
        %v1988 = vpop.f32.mrb[0].mxu0
        %v1989 = vadd.f32 0.0, %v1988
        %v1990 = vpop.f32.mrb[0].mxu0
        %1991 = vdwg.mxu0
        %1992 = vmatprep.subr.bf16.mxu0 0
        %1993 = vmatpush1.bf16.msra.mxu0 %v1622
        %1994 = vmatprep.subr.bf16.mxu0 0
        %1995 = vmatpush1.bf16.msra.mxu0 %v1623
        %1996 = vmatprep.subr.bf16.mxu0 0
        %1997 = vmatpush1.bf16.msra.mxu0 %v1624
        %1998 = vmatprep.subr.bf16.mxu0 0
        %1999 = vmatpush1.bf16.msra.mxu0 %v1625
        %2000 = vmatprep.subr.bf16.mxu0 0
        %2001 = vmatpush1.bf16.msra.mxu0 %v1626
        %2002 = vmatprep.subr.bf16.mxu0 0
        %2003 = vmatpush1.bf16.msra.mxu0 %v1627
        %2004 = vmatprep.subr.bf16.mxu0 0
        %2005 = vmatpush1.bf16.msra.mxu0 %v1628
        %2006 = vmatprep.subr.bf16.mxu0 0
        %2007 = vmatpush1.bf16.msra.mxu0 %v1629
        %2008 = vmatprep.subr.bf16.mxu0 0
        %2009 = vmatpush1.bf16.msra.mxu0 %v1630
        %2010 = vmatprep.subr.bf16.mxu0 0
        %2011 = vmatpush1.bf16.msra.mxu0 %v1631
        %2012 = vmatprep.subr.bf16.mxu0 0
        %2013 = vmatpush1.bf16.msra.mxu0 %v1632
        %2014 = vmatprep.subr.bf16.mxu0 0
        %2015 = vmatpush1.bf16.msra.mxu0 %v1633
        %2016 = vmatprep.subr.bf16.mxu0 0
        %2017 = vmatpush1.bf16.msra.mxu0 %v1634
        %2018 = vmatprep.subr.bf16.mxu0 0
        %2019 = vmatpush1.bf16.msra.mxu0 %v1635
        %2020 = vmatprep.subr.bf16.mxu0 0
        %2021 = vmatpush1.bf16.msra.mxu0 %v1636
        %2022 = vmatprep.subr.bf16.mxu0 0
        %2023 = vmatpush1.bf16.msra.mxu0 %v1637
        %2024 = vmatprep.mubr.bf16.mxu0 %v1920
        %2025 = vmatmul.mubr.bf16.gmra.mrb[0].mxu0 %v1919
        %v2026 = vpop.f32.mrb[0].mxu0
        %v2027 = vadd.f32 0.0, %v2026
        %v2028 = vpop.f32.mrb[0].mxu0
        %v2029 = vpop.f32.mrb[0].mxu0
        %v2030 = vadd.f32 0.0, %v2029
        %v2031 = vpop.f32.mrb[0].mxu0
        %2032 = vmatprep.mubr.bf16.mxu0 %v1922
        %2033 = vmatmul.mubr.bf16.gmra.mrb[0].mxu0 %v1921
        %v2034 = vpop.f32.mrb[0].mxu0
        %v2035 = vadd.f32 0.0, %v2034
        %v2036 = vpop.f32.mrb[0].mxu0
        %v2037 = vpop.f32.mrb[0].mxu0
        %v2038 = vadd.f32 0.0, %v2037
        %v2039 = vpop.f32.mrb[0].mxu0
        %2040 = vmatprep.mubr.bf16.mxu0 %v1924
        %2041 = vmatmul.mubr.bf16.gmra.mrb[0].mxu0 %v1923
        %v2042 = vpop.f32.mrb[0].mxu0
        %v2043 = vadd.f32 0.0, %v2042
        %v2044 = vpop.f32.mrb[0].mxu0
        %v2045 = vpop.f32.mrb[0].mxu0
        %v2046 = vadd.f32 0.0, %v2045
        %v2047 = vpop.f32.mrb[0].mxu0
        %2048 = vmatprep.mubr.bf16.mxu0 %v1926
        %2049 = vmatmul.mubr.bf16.gmra.mrb[0].mxu0 %v1925
        %v2050 = vpop.f32.mrb[0].mxu0
        %v2051 = vadd.f32 0.0, %v2050
        %v2052 = vpop.f32.mrb[0].mxu0
        %v2053 = vpop.f32.mrb[0].mxu0
        %v2054 = vadd.f32 0.0, %v2053
        %v2055 = vpop.f32.mrb[0].mxu0
        %2056 = vdwg.mxu0
        %v2057 = vrcp.pop %v2027
        %v2058 = vrcp.pop %v2030
        %v2059 = vrcp.pop %v2035
        %v2060 = vrcp.pop %v2038
        %v2061 = vrcp.pop %v2043
        %v2062 = vrcp.pop %v2046
        %v2063 = vrcp.pop %v2051
        %v2064 = vrcp.pop %v2054
        %v2065 = vmul.f32 %v1962, %v2057
        %v2066 = vmul.f32 %v1965, %v2058
        %v2067 = vmul.f32 %v1970, %v2059
        %v2068 = vmul.f32 %v1973, %v2060
        %v2069 = vmul.f32 %v1978, %v2061
        %v2070 = vmul.f32 %v1981, %v2062
        %v2071 = vmul.f32 %v1986, %v2063
        %v2072 = vmul.f32 %v1989, %v2064
        %v2073 = vpack.c.bf16 %v1326, %v1325
        %v2074 = vpack.c.bf16 %v1328, %v1327
        %v2075 = vpack.c.bf16 %v1330, %v1329
        %v2076 = vpack.c.bf16 %v1332, %v1331
        %v2077 = vmul.f32 %v1582, %v1590
        %v2078 = vmul.f32 %v1583, %v1591
        %v2079 = vmul.f32 %v1584, %v1592
        %v2080 = vmul.f32 %v1585, %v1593
        %v2081 = vmul.f32 %v1586, %v1594
        %v2082 = vmul.f32 %v1587, %v1595
        %v2083 = vmul.f32 %v1588, %v1596
        %v2084 = vmul.f32 %v1589, %v1597
        %v2085 = vmul.f32 %v1582, %v1598
        %v2086 = vmul.f32 %v1583, %v1599
        %v2087 = vmul.f32 %v1584, %v1600
        %v2088 = vmul.f32 %v1585, %v1601
        %v2089 = vmul.f32 %v1586, %v1602
        %v2090 = vmul.f32 %v1587, %v1603
        %v2091 = vmul.f32 %v1588, %v1604
        %v2092 = vmul.f32 %v1589, %v1605
        %v2093 = vmul.f32 %v1582, %v1606
        %v2094 = vmul.f32 %v1583, %v1607
        %v2095 = vmul.f32 %v1584, %v1608
        %v2096 = vmul.f32 %v1585, %v1609
        %v2097 = vmul.f32 %v1586, %v1610
        %v2098 = vmul.f32 %v1587, %v1611
        %v2099 = vmul.f32 %v1588, %v1612
        %v2100 = vmul.f32 %v1589, %v1613
        %v2101 = vmul.f32 %v1582, %v1614
        %v2102 = vmul.f32 %v1583, %v1615
        %v2103 = vmul.f32 %v1584, %v1616
        %v2104 = vmul.f32 %v1585, %v1617
        %v2105 = vmul.f32 %v1586, %v1618
        %v2106 = vmul.f32 %v1587, %v1619
        %v2107 = vmul.f32 %v1588, %v1620
        %v2108 = vmul.f32 %v1589, %v1621
        %v2109 = vpack.c.bf16 %v2078, %v2077
        %v2110 = vpack.c.bf16 %v2080, %v2079
        %v2111 = vpack.c.bf16 %v2082, %v2081
        %v2112 = vpack.c.bf16 %v2084, %v2083
        %v2113 = vpack.c.bf16 %v2086, %v2085
        %v2114 = vpack.c.bf16 %v2088, %v2087
        %v2115 = vpack.c.bf16 %v2090, %v2089
        %v2116 = vpack.c.bf16 %v2092, %v2091
        %v2117 = vpack.c.bf16 %v2094, %v2093
        %v2118 = vpack.c.bf16 %v2096, %v2095
        %v2119 = vpack.c.bf16 %v2098, %v2097
        %v2120 = vpack.c.bf16 %v2100, %v2099
        %v2121 = vpack.c.bf16 %v2102, %v2101
        %v2122 = vpack.c.bf16 %v2104, %v2103
        %v2123 = vpack.c.bf16 %v2106, %v2105
        %v2124 = vpack.c.bf16 %v2108, %v2107
        %v2125 = vmul.f32 %v1041, %v1590
        %v2126 = vmul.f32 %v1042, %v1591
        %v2127 = vmul.f32 %v1043, %v1592
        %v2128 = vmul.f32 %v1044, %v1593
        %v2129 = vmul.f32 %v1045, %v1594
        %v2130 = vmul.f32 %v1046, %v1595
        %v2131 = vmul.f32 %v1047, %v1596
        %v2132 = vmul.f32 %v1048, %v1597
        %v2133 = vmul.f32 %v1041, %v1598
        %v2134 = vmul.f32 %v1042, %v1599
        %v2135 = vmul.f32 %v1043, %v1600
        %v2136 = vmul.f32 %v1044, %v1601
        %v2137 = vmul.f32 %v1045, %v1602
        %v2138 = vmul.f32 %v1046, %v1603
        %v2139 = vmul.f32 %v1047, %v1604
        %v2140 = vmul.f32 %v1048, %v1605
        %v2141 = vmul.f32 %v1041, %v1606
        %v2142 = vmul.f32 %v1042, %v1607
        %v2143 = vmul.f32 %v1043, %v1608
        %v2144 = vmul.f32 %v1044, %v1609
        %v2145 = vmul.f32 %v1045, %v1610
        %v2146 = vmul.f32 %v1046, %v1611
        %v2147 = vmul.f32 %v1047, %v1612
        %v2148 = vmul.f32 %v1048, %v1613
        %v2149 = vmul.f32 %v1041, %v1614
        %v2150 = vmul.f32 %v1042, %v1615
        %v2151 = vmul.f32 %v1043, %v1616
        %v2152 = vmul.f32 %v1044, %v1617
        %v2153 = vmul.f32 %v1045, %v1618
        %v2154 = vmul.f32 %v1046, %v1619
        %v2155 = vmul.f32 %v1047, %v1620
        %v2156 = vmul.f32 %v1048, %v1621
        %v2157 = vpack.c.bf16 %v2126, %v2125
        %v2158 = vpack.c.bf16 %v2128, %v2127
        %v2159 = vpack.c.bf16 %v2130, %v2129
        %v2160 = vpack.c.bf16 %v2132, %v2131
        %v2161 = vpack.c.bf16 %v2134, %v2133
        %v2162 = vpack.c.bf16 %v2136, %v2135
        %v2163 = vpack.c.bf16 %v2138, %v2137
        %v2164 = vpack.c.bf16 %v2140, %v2139
        %v2165 = vpack.c.bf16 %v2142, %v2141
        %v2166 = vpack.c.bf16 %v2144, %v2143
        %v2167 = vpack.c.bf16 %v2146, %v2145
        %v2168 = vpack.c.bf16 %v2148, %v2147
        %v2169 = vpack.c.bf16 %v2150, %v2149
        %v2170 = vpack.c.bf16 %v2152, %v2151
        %v2171 = vpack.c.bf16 %v2154, %v2153
        %v2172 = vpack.c.bf16 %v2156, %v2155
        %v2174 = vsel %vm471, %v2073, 0
        %v2177 = vsel %vm471, %v2074, 0
        %v2180 = vsel %vm471, %v2075, 0
        %v2183 = vsel %vm471, %v2076, 0
        %v2186 = vsel %vm471, %v2109, 0
        %v2189 = vsel %vm471, %v2110, 0
        %v2192 = vsel %vm471, %v2111, 0
        %v2195 = vsel %vm471, %v2112, 0
        %v2198 = vsel %vm471, %v2113, 0
        %v2201 = vsel %vm471, %v2114, 0
        %v2204 = vsel %vm471, %v2115, 0
        %v2207 = vsel %vm471, %v2116, 0
        %v2210 = vsel %vm471, %v2117, 0
        %v2213 = vsel %vm471, %v2118, 0
        %v2216 = vsel %vm471, %v2119, 0
        %v2219 = vsel %vm471, %v2120, 0
        %v2222 = vsel %vm471, %v2121, 0
        %v2225 = vsel %vm471, %v2122, 0
        %v2228 = vsel %vm471, %v2123, 0
        %v2231 = vsel %vm471, %v2124, 0
        %2233 = vmatprep.subr.bf16.mxu0 0
        %2234 = vmatpush1.bf16.xpose.msra.mxu0 %v2186
        %2235 = vmatprep.subr.bf16.mxu0 0
        %2236 = vmatpush1.bf16.xpose.msra.mxu0 %v2189
        %2237 = vmatprep.subr.bf16.mxu0 0
        %2238 = vmatpush1.bf16.xpose.msra.mxu0 %v2192
        %2239 = vmatprep.subr.bf16.mxu0 0
        %2240 = vmatpush1.bf16.xpose.msra.mxu0 %v2195
        %2241 = vmatprep.subr.bf16.mxu0 0
        %2242 = vmatpush1.bf16.xpose.msra.mxu0 %v2198
        %2243 = vmatprep.subr.bf16.mxu0 0
        %2244 = vmatpush1.bf16.xpose.msra.mxu0 %v2201
        %2245 = vmatprep.subr.bf16.mxu0 0
        %2246 = vmatpush1.bf16.xpose.msra.mxu0 %v2204
        %2247 = vmatprep.subr.bf16.mxu0 0
        %2248 = vmatpush1.bf16.xpose.msra.mxu0 %v2207
        %2249 = vmatprep.subr.bf16.mxu0 0
        %2250 = vmatpush1.bf16.xpose.msra.mxu0 %v2210
        %2251 = vmatprep.subr.bf16.mxu0 0
        %2252 = vmatpush1.bf16.xpose.msra.mxu0 %v2213
        %2253 = vmatprep.subr.bf16.mxu0 0
        %2254 = vmatpush1.bf16.xpose.msra.mxu0 %v2216
        %2255 = vmatprep.subr.bf16.mxu0 0
        %2256 = vmatpush1.bf16.xpose.msra.mxu0 %v2219
        %2257 = vmatprep.subr.bf16.mxu0 0
        %2258 = vmatpush1.bf16.xpose.msra.mxu0 %v2222
        %2259 = vmatprep.subr.bf16.mxu0 0
        %2260 = vmatpush1.bf16.xpose.msra.mxu0 %v2225
        %2261 = vmatprep.subr.bf16.mxu0 0
        %2262 = vmatpush1.bf16.xpose.msra.mxu0 %v2228
        %2263 = vmatprep.subr.bf16.mxu0 0
        %2264 = vmatpush1.bf16.xpose.msra.mxu0 %v2231
        %2265 = vmatprep.mubr.bf16.mxu0 0
        %2266 = vmatmul.mubr.bf16.gmra.mrb[0].mxu0 %v2174
        %v2267 = vpop.f32.mrb[0].mxu0
        %v2268 = vadd.f32 %v1738, %v2267
        %v2269 = vpop.f32.mrb[0].mxu0
        %v2270 = vadd.f32 %v1739, %v2269
        %v2271 = vpop.f32.mrb[0].mxu0
        %v2272 = vadd.f32 %v1740, %v2271
        %v2273 = vpop.f32.mrb[0].mxu0
        %v2274 = vadd.f32 %v1741, %v2273
        %2275 = vmatprep.mubr.bf16.mxu0 0
        %2276 = vmatmul.mubr.bf16.gmra.mrb[0].mxu0 %v2177
        %v2277 = vpop.f32.mrb[0].mxu0
        %v2278 = vadd.f32 %v1742, %v2277
        %v2279 = vpop.f32.mrb[0].mxu0
        %v2280 = vadd.f32 %v1743, %v2279
        %v2281 = vpop.f32.mrb[0].mxu0
        %v2282 = vadd.f32 %v1744, %v2281
        %v2283 = vpop.f32.mrb[0].mxu0
        %v2284 = vadd.f32 %v1745, %v2283
        %2285 = vmatprep.mubr.bf16.mxu0 0
        %2286 = vmatmul.mubr.bf16.gmra.mrb[0].mxu0 %v2180
        %v2287 = vpop.f32.mrb[0].mxu0
        %v2288 = vadd.f32 %v1746, %v2287
        %v2289 = vpop.f32.mrb[0].mxu0
        %v2290 = vadd.f32 %v1747, %v2289
        %v2291 = vpop.f32.mrb[0].mxu0
        %v2292 = vadd.f32 %v1748, %v2291
        %v2293 = vpop.f32.mrb[0].mxu0
        %v2294 = vadd.f32 %v1749, %v2293
        %2295 = vmatprep.mubr.bf16.mxu0 0
        %2296 = vmatmul.mubr.bf16.gmra.mrb[0].mxu0 %v2183
        %v2297 = vpop.f32.mrb[0].mxu0
        %v2298 = vadd.f32 %v1750, %v2297
        %v2299 = vpop.f32.mrb[0].mxu0
        %v2300 = vadd.f32 %v1751, %v2299
        %v2301 = vpop.f32.mrb[0].mxu0
        %v2302 = vadd.f32 %v1752, %v2301
        %v2303 = vpop.f32.mrb[0].mxu0
        %v2304 = vadd.f32 %v1753, %v2303
        %2305 = vdwg.mxu0
        %v2306 = vmul.f32 %v2268, 1.442695
        %v2307 = vpow.pop %v2306
        %v2308 = vmul.f32 %v2270, 1.442695
        %v2309 = vpow.pop %v2308
        %v2310 = vmul.f32 %v2272, 1.442695
        %v2311 = vpow.pop %v2310
        %v2312 = vmul.f32 %v2274, 1.442695
        %v2313 = vpow.pop %v2312
        %v2314 = vmul.f32 %v2278, 1.442695
        %v2315 = vpow.pop %v2314
        %v2316 = vmul.f32 %v2280, 1.442695
        %v2317 = vpow.pop %v2316
        %v2318 = vmul.f32 %v2282, 1.442695
        %v2319 = vpow.pop %v2318
        %v2320 = vmul.f32 %v2284, 1.442695
        %v2321 = vpow.pop %v2320
        %v2322 = vmul.f32 %v2288, 1.442695
        %v2323 = vpow.pop %v2322
        %v2324 = vmul.f32 %v2290, 1.442695
        %v2325 = vpow.pop %v2324
        %v2326 = vmul.f32 %v2292, 1.442695
        %v2327 = vpow.pop %v2326
        %v2328 = vmul.f32 %v2294, 1.442695
        %v2329 = vpow.pop %v2328
        %v2330 = vmul.f32 %v2298, 1.442695
        %v2331 = vpow.pop %v2330
        %v2332 = vmul.f32 %v2300, 1.442695
        %v2333 = vpow.pop %v2332
        %v2334 = vmul.f32 %v2302, 1.442695
        %v2335 = vpow.pop %v2334
        %v2336 = vmul.f32 %v2304, 1.442695
        %v2337 = vpow.pop %v2336
        %v2338 = vpack.c.bf16 %v2311, %v2307
        %v2339 = vpack.c.bf16 %v2313, %v2309
        %v2340 = vpack.c.bf16 %v2319, %v2315
        %v2341 = vpack.c.bf16 %v2321, %v2317
        %v2342 = vpack.c.bf16 %v2327, %v2323
        %v2343 = vpack.c.bf16 %v2329, %v2325
        %v2344 = vpack.c.bf16 %v2335, %v2331
        %v2345 = vpack.c.bf16 %v2337, %v2333
        %2346 = vmatprep.subr.bf16.mxu0 0
        %2347 = vmatpush1.bf16.msra.mxu0 %v2157
        %2348 = vmatprep.subr.bf16.mxu0 0
        %2349 = vmatpush1.bf16.msra.mxu0 %v2158
        %2350 = vmatprep.subr.bf16.mxu0 0
        %2351 = vmatpush1.bf16.msra.mxu0 %v2159
        %2352 = vmatprep.subr.bf16.mxu0 0
        %2353 = vmatpush1.bf16.msra.mxu0 %v2160
        %2354 = vmatprep.subr.bf16.mxu0 0
        %2355 = vmatpush1.bf16.msra.mxu0 %v2161
        %2356 = vmatprep.subr.bf16.mxu0 0
        %2357 = vmatpush1.bf16.msra.mxu0 %v2162
        %2358 = vmatprep.subr.bf16.mxu0 0
        %2359 = vmatpush1.bf16.msra.mxu0 %v2163
        %2360 = vmatprep.subr.bf16.mxu0 0
        %2361 = vmatpush1.bf16.msra.mxu0 %v2164
        %2362 = vmatprep.subr.bf16.mxu0 0
        %2363 = vmatpush1.bf16.msra.mxu0 %v2165
        %2364 = vmatprep.subr.bf16.mxu0 0
        %2365 = vmatpush1.bf16.msra.mxu0 %v2166
        %2366 = vmatprep.subr.bf16.mxu0 0
        %2367 = vmatpush1.bf16.msra.mxu0 %v2167
        %2368 = vmatprep.subr.bf16.mxu0 0
        %2369 = vmatpush1.bf16.msra.mxu0 %v2168
        %2370 = vmatprep.subr.bf16.mxu0 0
        %2371 = vmatpush1.bf16.msra.mxu0 %v2169
        %2372 = vmatprep.subr.bf16.mxu0 0
        %2373 = vmatpush1.bf16.msra.mxu0 %v2170
        %2374 = vmatprep.subr.bf16.mxu0 0
        %2375 = vmatpush1.bf16.msra.mxu0 %v2171
        %2376 = vmatprep.subr.bf16.mxu0 0
        %2377 = vmatpush1.bf16.msra.mxu0 %v2172
        %2378 = vmatprep.mubr.bf16.mxu0 %v2339
        %2379 = vmatmul.mubr.bf16.gmra.mrb[0].mxu0 %v2338
        %v2380 = vpop.f32.mrb[0].mxu0
        %v2381 = vadd.f32 0.0, %v2380
        %v2382 = vpop.f32.mrb[0].mxu0
        %v2383 = vpop.f32.mrb[0].mxu0
        %v2384 = vadd.f32 0.0, %v2383
        %v2385 = vpop.f32.mrb[0].mxu0
        %2386 = vmatprep.mubr.bf16.mxu0 %v2341
        %2387 = vmatmul.mubr.bf16.gmra.mrb[0].mxu0 %v2340
        %v2388 = vpop.f32.mrb[0].mxu0
        %v2389 = vadd.f32 0.0, %v2388
        %v2390 = vpop.f32.mrb[0].mxu0
        %v2391 = vpop.f32.mrb[0].mxu0
        %v2392 = vadd.f32 0.0, %v2391
        %v2393 = vpop.f32.mrb[0].mxu0
        %2394 = vmatprep.mubr.bf16.mxu0 %v2343
        %2395 = vmatmul.mubr.bf16.gmra.mrb[0].mxu0 %v2342
        %v2396 = vpop.f32.mrb[0].mxu0
        %v2397 = vadd.f32 0.0, %v2396
        %v2398 = vpop.f32.mrb[0].mxu0
        %v2399 = vpop.f32.mrb[0].mxu0
        %v2400 = vadd.f32 0.0, %v2399
        %v2401 = vpop.f32.mrb[0].mxu0
        %2402 = vmatprep.mubr.bf16.mxu0 %v2345
        %2403 = vmatmul.mubr.bf16.gmra.mrb[0].mxu0 %v2344
        %v2404 = vpop.f32.mrb[0].mxu0
        %v2405 = vadd.f32 0.0, %v2404
        %v2406 = vpop.f32.mrb[0].mxu0
        %v2407 = vpop.f32.mrb[0].mxu0
        %v2408 = vadd.f32 0.0, %v2407
        %v2409 = vpop.f32.mrb[0].mxu0
        %2410 = vdwg.mxu0
        %2411 = vmatprep.subr.bf16.mxu0 0
        %2412 = vmatpush1.bf16.msra.mxu0 %v1622
        %2413 = vmatprep.subr.bf16.mxu0 0
        %2414 = vmatpush1.bf16.msra.mxu0 %v1623
        %2415 = vmatprep.subr.bf16.mxu0 0
        %2416 = vmatpush1.bf16.msra.mxu0 %v1624
        %2417 = vmatprep.subr.bf16.mxu0 0
        %2418 = vmatpush1.bf16.msra.mxu0 %v1625
        %2419 = vmatprep.subr.bf16.mxu0 0
        %2420 = vmatpush1.bf16.msra.mxu0 %v1626
        %2421 = vmatprep.subr.bf16.mxu0 0
        %2422 = vmatpush1.bf16.msra.mxu0 %v1627
        %2423 = vmatprep.subr.bf16.mxu0 0
        %2424 = vmatpush1.bf16.msra.mxu0 %v1628
        %2425 = vmatprep.subr.bf16.mxu0 0
        %2426 = vmatpush1.bf16.msra.mxu0 %v1629
        %2427 = vmatprep.subr.bf16.mxu0 0
        %2428 = vmatpush1.bf16.msra.mxu0 %v1630
        %2429 = vmatprep.subr.bf16.mxu0 0
        %2430 = vmatpush1.bf16.msra.mxu0 %v1631
        %2431 = vmatprep.subr.bf16.mxu0 0
        %2432 = vmatpush1.bf16.msra.mxu0 %v1632
        %2433 = vmatprep.subr.bf16.mxu0 0
        %2434 = vmatpush1.bf16.msra.mxu0 %v1633
        %2435 = vmatprep.subr.bf16.mxu0 0
        %2436 = vmatpush1.bf16.msra.mxu0 %v1634
        %2437 = vmatprep.subr.bf16.mxu0 0
        %2438 = vmatpush1.bf16.msra.mxu0 %v1635
        %2439 = vmatprep.subr.bf16.mxu0 0
        %2440 = vmatpush1.bf16.msra.mxu0 %v1636
        %2441 = vmatprep.subr.bf16.mxu0 0
        %2442 = vmatpush1.bf16.msra.mxu0 %v1637
        %2443 = vmatprep.mubr.bf16.mxu0 %v2339
        %2444 = vmatmul.mubr.bf16.gmra.mrb[0].mxu0 %v2338
        %v2445 = vpop.f32.mrb[0].mxu0
        %v2446 = vadd.f32 0.0, %v2445
        %v2447 = vpop.f32.mrb[0].mxu0
        %v2448 = vpop.f32.mrb[0].mxu0
        %v2449 = vadd.f32 0.0, %v2448
        %v2450 = vpop.f32.mrb[0].mxu0
        %2451 = vmatprep.mubr.bf16.mxu0 %v2341
        %2452 = vmatmul.mubr.bf16.gmra.mrb[0].mxu0 %v2340
        %v2453 = vpop.f32.mrb[0].mxu0
        %v2454 = vadd.f32 0.0, %v2453
        %v2455 = vpop.f32.mrb[0].mxu0
        %v2456 = vpop.f32.mrb[0].mxu0
        %v2457 = vadd.f32 0.0, %v2456
        %v2458 = vpop.f32.mrb[0].mxu0
        %2459 = vmatprep.mubr.bf16.mxu0 %v2343
        %2460 = vmatmul.mubr.bf16.gmra.mrb[0].mxu0 %v2342
        %v2461 = vpop.f32.mrb[0].mxu0
        %v2462 = vadd.f32 0.0, %v2461
        %v2463 = vpop.f32.mrb[0].mxu0
        %v2464 = vpop.f32.mrb[0].mxu0
        %v2465 = vadd.f32 0.0, %v2464
        %v2466 = vpop.f32.mrb[0].mxu0
        %2467 = vmatprep.mubr.bf16.mxu0 %v2345
        %2468 = vmatmul.mubr.bf16.gmra.mrb[0].mxu0 %v2344
        %v2469 = vpop.f32.mrb[0].mxu0
        %v2470 = vadd.f32 0.0, %v2469
        %v2471 = vpop.f32.mrb[0].mxu0
        %v2472 = vpop.f32.mrb[0].mxu0
        %v2473 = vadd.f32 0.0, %v2472
        %v2474 = vpop.f32.mrb[0].mxu0
        %2475 = vdwg.mxu0
        %v2476 = vrcp.pop %v2446
        %v2477 = vrcp.pop %v2449
        %v2478 = vrcp.pop %v2454
        %v2479 = vrcp.pop %v2457
        %v2480 = vrcp.pop %v2462
        %v2481 = vrcp.pop %v2465
        %v2482 = vrcp.pop %v2470
        %v2483 = vrcp.pop %v2473
        %v2484 = vmul.f32 %v2381, %v2476
        %v2485 = vmul.f32 %v2384, %v2477
        %v2486 = vmul.f32 %v2389, %v2478
        %v2487 = vmul.f32 %v2392, %v2479
        %v2488 = vmul.f32 %v2397, %v2480
        %v2489 = vmul.f32 %v2400, %v2481
        %v2490 = vmul.f32 %v2405, %v2482
        %v2491 = vmul.f32 %v2408, %v2483
        %v2492 = vld [vmem:[%s4] sm:$0xff]
        %v2493 = vld [vmem:[%s4 + $0x8] sm:$0xff]
        %v2494 = vld [vmem:[%s4 + $0x10] sm:$0xff]
        %v2495 = vld [vmem:[%s4 + $0x18] sm:$0xff]
        %v2496 = vld [vmem:[%s5] sm:$0x1]
        %v2498 = vlaneseq
        %v2499 = vshrl.u32 %v2498, 7
        %v2500 = vsub.s32 0, %v2499
        %v2501 = vrot.slane %v2496, %v2500
        %v2504 = vsel %vm471, %v2065, 0
        %v2507 = vsel %vm471, %v2066, 0
        %v2510 = vsel %vm471, %v2067, 0
        %v2513 = vsel %vm471, %v2068, 0
        %v2516 = vsel %vm471, %v2069, 0
        %v2519 = vsel %vm471, %v2070, 0
        %v2522 = vsel %vm471, %v2071, 0
        %v2525 = vsel %vm471, %v2072, 0
        %v2528 = vsel %vm471, %v2484, 0
        %v2531 = vsel %vm471, %v2485, 0
        %v2534 = vsel %vm471, %v2486, 0
        %v2537 = vsel %vm471, %v2487, 0
        %v2540 = vsel %vm471, %v2488, 0
        %v2543 = vsel %vm471, %v2489, 0
        %v2546 = vsel %vm471, %v2490, 0
        %v2549 = vsel %vm471, %v2491, 0
        %2551 = vmatprep.subr.mxu0 0.0
        %2552 = vmatpush1.msra.mxu0 %v2492
        %2553 = vmatprep.subr.mxu0 0.0
        %2554 = vmatpush1.msra.mxu0 %v2493
        %2555 = vmatprep.subr.mxu0 0.0
        %2556 = vmatpush1.msra.mxu0 %v2494
        %2557 = vmatprep.subr.mxu0 0.0
        %2558 = vmatpush1.msra.mxu0 %v2495
        %2559 = vmatprep.subr.mxu0 0.0
        %2560 = vmatpush1.msra.mxu0 0.0
        %2561 = vmatprep.subr.mxu0 0.0
        %2562 = vmatpush1.msra.mxu0 0.0
        %2563 = vmatprep.subr.mxu0 0.0
        %2564 = vmatpush1.msra.mxu0 0.0
        %2565 = vmatprep.subr.mxu0 0.0
        %2566 = vmatpush1.msra.mxu0 0.0
        %2567 = vmatprep.subr.mxu0 0.0
        %2568 = vmatpush1.msra.mxu0 0.0
        %2569 = vmatprep.subr.mxu0 0.0
        %2570 = vmatpush1.msra.mxu0 0.0
        %2571 = vmatprep.subr.mxu0 0.0
        %2572 = vmatpush1.msra.mxu0 0.0
        %2573 = vmatprep.subr.mxu0 0.0
        %2574 = vmatpush1.msra.mxu0 0.0
        %2575 = vmatprep.subr.mxu0 0.0
        %2576 = vmatpush1.msra.mxu0 0.0
        %2577 = vmatprep.subr.mxu0 0.0
        %2578 = vmatpush1.msra.mxu0 0.0
        %2579 = vmatprep.subr.mxu0 0.0
        %2580 = vmatpush1.msra.mxu0 0.0
        %2581 = vmatprep.subr.mxu0 0.0
        %2582 = vmatpush1.msra.mxu0 0.0
        %2583 = vmatprep.subr.mxu0 0.0
        %2584 = vmatpush1.msra.mxu0 0.0
        %2585 = vmatprep.subr.mxu0 0.0
        %2586 = vmatpush1.msra.mxu0 0.0
        %2587 = vmatprep.subr.mxu0 0.0
        %2588 = vmatpush1.msra.mxu0 0.0
        %2589 = vmatprep.subr.mxu0 0.0
        %2590 = vmatpush1.msra.mxu0 0.0
        %2591 = vmatprep.subr.mxu0 0.0
        %2592 = vmatpush1.msra.mxu0 0.0
        %2593 = vmatprep.subr.mxu0 0.0
        %2594 = vmatpush1.msra.mxu0 0.0
        %2595 = vmatprep.subr.mxu0 0.0
        %2596 = vmatpush1.msra.mxu0 0.0
        %2597 = vmatprep.subr.mxu0 0.0
        %2598 = vmatpush1.msra.mxu0 0.0
        %2599 = vmatprep.subr.mxu0 0.0
        %2600 = vmatpush1.msra.mxu0 0.0
        %2601 = vmatprep.subr.mxu0 0.0
        %2602 = vmatpush1.msra.mxu0 0.0
        %2603 = vmatprep.subr.mxu0 0.0
        %2604 = vmatpush1.msra.mxu0 0.0
        %2605 = vmatprep.subr.mxu0 0.0
        %2606 = vmatpush1.msra.mxu0 0.0
        %2607 = vmatprep.subr.mxu0 0.0
        %2608 = vmatpush1.msra.mxu0 0.0
        %2609 = vmatprep.subr.mxu0 0.0
        %2610 = vmatpush1.msra.mxu0 0.0
        %2611 = vmatprep.subr.mxu0 0.0
        %2612 = vmatpush1.msra.mxu0 0.0
        %2613 = vmatprep.subr.mxu0 0.0
        %2614 = vmatpush1.msra.mxu0 0.0
        %2615 = vmatprep.mubr.f32.mxu0 0.0
        %2616 = vmatmul.mubr.f32.gmra.mrb[0].mxu0 %v2504
        %v2617 = vpop.f32.mrb[0].mxu0
        %v2618 = vadd.f32 %v2501, %v2617
        %v2619 = vpop.f32.mrb[0].mxu0
        %2620 = vmatprep.mubr.f32.mxu0 0.0
        %2621 = vmatmul.mubr.f32.gmra.mrb[0].mxu0 %v2507
        %v2622 = vpop.f32.mrb[0].mxu0
        %v2623 = vadd.f32 %v2501, %v2622
        %v2624 = vpop.f32.mrb[0].mxu0
        %2625 = vmatprep.mubr.f32.mxu0 0.0
        %2626 = vmatmul.mubr.f32.gmra.mrb[0].mxu0 %v2510
        %v2627 = vpop.f32.mrb[0].mxu0
        %v2628 = vadd.f32 %v2501, %v2627
        %v2629 = vpop.f32.mrb[0].mxu0
        %2630 = vmatprep.mubr.f32.mxu0 0.0
        %2631 = vmatmul.mubr.f32.gmra.mrb[0].mxu0 %v2513
        %v2632 = vpop.f32.mrb[0].mxu0
        %v2633 = vadd.f32 %v2501, %v2632
        %v2634 = vpop.f32.mrb[0].mxu0
        %2635 = vmatprep.mubr.f32.mxu0 0.0
        %2636 = vmatmul.mubr.f32.gmra.mrb[0].mxu0 %v2516
        %v2637 = vpop.f32.mrb[0].mxu0
        %v2638 = vadd.f32 %v2501, %v2637
        %v2639 = vpop.f32.mrb[0].mxu0
        %2640 = vmatprep.mubr.f32.mxu0 0.0
        %2641 = vmatmul.mubr.f32.gmra.mrb[0].mxu0 %v2519
        %v2642 = vpop.f32.mrb[0].mxu0
        %v2643 = vadd.f32 %v2501, %v2642
        %v2644 = vpop.f32.mrb[0].mxu0
        %2645 = vmatprep.mubr.f32.mxu0 0.0
        %2646 = vmatmul.mubr.f32.gmra.mrb[0].mxu0 %v2522
        %v2647 = vpop.f32.mrb[0].mxu0
        %v2648 = vadd.f32 %v2501, %v2647
        %v2649 = vpop.f32.mrb[0].mxu0
        %2650 = vmatprep.mubr.f32.mxu0 0.0
        %2651 = vmatmul.mubr.f32.gmra.mrb[0].mxu0 %v2525
        %v2652 = vpop.f32.mrb[0].mxu0
        %v2653 = vadd.f32 %v2501, %v2652
        %v2654 = vpop.f32.mrb[0].mxu0
        %2655 = vmatprep.mubr.f32.mxu0 0.0
        %2656 = vmatmul.mubr.f32.gmra.mrb[0].mxu0 %v2528
        %v2657 = vpop.f32.mrb[0].mxu0
        %v2658 = vadd.f32 %v2501, %v2657
        %v2659 = vpop.f32.mrb[0].mxu0
        %2660 = vmatprep.mubr.f32.mxu0 0.0
        %2661 = vmatmul.mubr.f32.gmra.mrb[0].mxu0 %v2531
        %v2662 = vpop.f32.mrb[0].mxu0
        %v2663 = vadd.f32 %v2501, %v2662
        %v2664 = vpop.f32.mrb[0].mxu0
        %2665 = vmatprep.mubr.f32.mxu0 0.0
        %2666 = vmatmul.mubr.f32.gmra.mrb[0].mxu0 %v2534
        %v2667 = vpop.f32.mrb[0].mxu0
        %v2668 = vadd.f32 %v2501, %v2667
        %v2669 = vpop.f32.mrb[0].mxu0
        %2670 = vmatprep.mubr.f32.mxu0 0.0
        %2671 = vmatmul.mubr.f32.gmra.mrb[0].mxu0 %v2537
        %v2672 = vpop.f32.mrb[0].mxu0
        %v2673 = vadd.f32 %v2501, %v2672
        %v2674 = vpop.f32.mrb[0].mxu0
        %2675 = vmatprep.mubr.f32.mxu0 0.0
        %2676 = vmatmul.mubr.f32.gmra.mrb[0].mxu0 %v2540
        %v2677 = vpop.f32.mrb[0].mxu0
        %v2678 = vadd.f32 %v2501, %v2677
        %v2679 = vpop.f32.mrb[0].mxu0
        %2680 = vmatprep.mubr.f32.mxu0 0.0
        %2681 = vmatmul.mubr.f32.gmra.mrb[0].mxu0 %v2543
        %v2682 = vpop.f32.mrb[0].mxu0
        %v2683 = vadd.f32 %v2501, %v2682
        %v2684 = vpop.f32.mrb[0].mxu0
        %2685 = vmatprep.mubr.f32.mxu0 0.0
        %2686 = vmatmul.mubr.f32.gmra.mrb[0].mxu0 %v2546
        %v2687 = vpop.f32.mrb[0].mxu0
        %v2688 = vadd.f32 %v2501, %v2687
        %v2689 = vpop.f32.mrb[0].mxu0
        %2690 = vmatprep.mubr.f32.mxu0 0.0
        %2691 = vmatmul.mubr.f32.gmra.mrb[0].mxu0 %v2549
        %v2692 = vpop.f32.mrb[0].mxu0
        %v2693 = vadd.f32 %v2501, %v2692
        %v2694 = vpop.f32.mrb[0].mxu0
        %2695 = vdwg.mxu0
        %2696 = vst.msk [vmem:[%s441] sm:$0xff] %vm471, %v2618
        %2697 = vst.msk [vmem:[%s441 + $0x8] sm:$0xff] %vm471, %v2623
        %2698 = vst.msk [vmem:[%s441 + $0x10] sm:$0xff] %vm471, %v2628
        %2699 = vst.msk [vmem:[%s441 + $0x18] sm:$0xff] %vm471, %v2633
        %2700 = vst.msk [vmem:[%s441 + $0x20] sm:$0xff] %vm471, %v2638
        %2701 = vst.msk [vmem:[%s441 + $0x28] sm:$0xff] %vm471, %v2643
        %2702 = vst.msk [vmem:[%s441 + $0x30] sm:$0xff] %vm471, %v2648
        %2703 = vst.msk [vmem:[%s441 + $0x38] sm:$0xff] %vm471, %v2653
        %2704 = vst.msk [vmem:[%s441 + $0x40] sm:$0xff] %vm471, %v2658
        %2705 = vst.msk [vmem:[%s441 + $0x48] sm:$0xff] %vm471, %v2663
        %2706 = vst.msk [vmem:[%s441 + $0x50] sm:$0xff] %vm471, %v2668
        %2707 = vst.msk [vmem:[%s441 + $0x58] sm:$0xff] %vm471, %v2673
        %2708 = vst.msk [vmem:[%s441 + $0x60] sm:$0xff] %vm471, %v2678
        %2709 = vst.msk [vmem:[%s441 + $0x68] sm:$0xff] %vm471, %v2683
        %2710 = vst.msk [vmem:[%s441 + $0x70] sm:$0xff] %vm471, %v2688
        %2711 = vst.msk [vmem:[%s441 + $0x78] sm:$0xff] %vm471, %v2693
        %s2712 = smul.u32 2, %s24
        %p2713 = scmp.lt.s32.totalorder %s2712, 3
        %s2714 = scalar_select %p2713, %s2712, 3
        %s2715 = smul.addr %s2714, 8
        %s2716 = smul.addr %s2715, 8
        %s2717 = scalar_lea.vmem %s10, %s2716
        %s2718 = smul.u32 2, %s24
        %p2719 = scmp.lt.s32.totalorder %s2718, 3
        %s2720 = scalar_select %p2719, %s2718, 3
        %s2721 = smul.addr %s2720, 8
        %s2722 = smul.addr %s2721, 8
        %s2723 = scalar_lea.vmem %s11, %s2722
        // Predicated region
        $region65: #{tpu_custom_call.1} parent=59 // pred_check
          %p2724 = pneg %p262
        $region66: #{tpu_custom_call.1} parent=59 // pred_check_branch
          %2726 = sbr.rel (%p2724) target = $region68
        $region67: #{tpu_custom_call.1} parent=59 // pred_region
          %s2727 = smul.u32 2, %s24
        $region68: #{tpu_custom_call.1} parent=59 // pred_fallthru
          _
        // Predicated region
        $region69: #{tpu_custom_call.1} parent=59 // pred_check
          %p2728 = pneg %p288
        $region70: #{tpu_custom_call.1} parent=59 // pred_check_branch
          %2730 = sbr.rel (%p2728) target = $region72
        $region71: #{tpu_custom_call.1} parent=59 // pred_region
          %s2731 = smul.u32 2, %s24
        $region72: #{tpu_custom_call.1} parent=59 // pred_fallthru
          _
      $region60: #{tpu_custom_call.1} parent=5 // pred_fallthru
        _
      %p2732 = scmp.le.s32.totalorder 2, %s19
      // Predicated region
      $region73: #{tpu_custom_call.1} parent=5 // pred_check
        %p2733 = pneg %p2732
      $region74: #{tpu_custom_call.1} parent=5 // pred_check_branch
        %2735 = sbr.rel (%p2733) target = $region76
      $region75: #{tpu_custom_call.1} parent=5 // pred_region
        %s2736 = ssub.s32 %s19, 2
        // Predicated region
        $region77: #{tpu_custom_call.1} parent=75 // pred_check
          %p2737 = pneg %p268
        $region78: #{tpu_custom_call.1} parent=75 // pred_check_branch
          %2739 = sbr.rel (%p2737) target = $region80
        $region79: #{tpu_custom_call.1} parent=75 // pred_region
          %s2740 = smul.u32 2, %s25
          %p2741 = scmp.lt.s32.totalorder %s2740, 3
          %s2742 = scalar_select %p2741, %s2740, 3
          %s2743 = smul.addr %s2742, 8
          %s2744 = smul.addr %s2743, 8
          %s2745 = scalar_lea.vmem %s10, %s2744
        $region80: #{tpu_custom_call.1} parent=75 // pred_fallthru
          _
        // Predicated region
        $region81: #{tpu_custom_call.1} parent=75 // pred_check
          %p2746 = pneg %p294
        $region82: #{tpu_custom_call.1} parent=75 // pred_check_branch
          %2748 = sbr.rel (%p2746) target = $region84
        $region83: #{tpu_custom_call.1} parent=75 // pred_region
          %s2749 = smul.u32 2, %s25
          %p2750 = scmp.lt.s32.totalorder %s2749, 3
          %s2751 = scalar_select %p2750, %s2749, 3
          %s2752 = smul.addr %s2751, 8
          %s2753 = smul.addr %s2752, 8
          %s2754 = scalar_lea.vmem %s11, %s2753
        $region84: #{tpu_custom_call.1} parent=75 // pred_fallthru
          _
      $region76: #{tpu_custom_call.1} parent=5 // pred_fallthru
        _
    $region6: #{tpu_custom_call.1} parent=1 // loop_footer
      %s23 = sadd.s32 1, %s19
    $region7: #{tpu_custom_call.1} parent=1 // loop_footer_branch
      %18 = sbr.rel target = $region3
    $region8: #{tpu_custom_call.1} parent=1 // loop_exit
      _
    %2755 = vsyncpa [#allocation3], 1
    %s2756 = scalar_lea.sflag [#allocation3], 1
    %2757 = vsyncpa %s2756, 1

</llo_original>
